<compile_context>
chip_gen: v7x
topology: tpu7x:2x2x1
jax: 0.10.0
libtpu: 0.0.40
codegen_flags: <defaults>
</compile_context>

<pallas_src>
import functools
from math import sqrt

import jax
import jax.numpy as jnp
from jax import lax
from jax.experimental import pallas as pl
from jax.experimental.pallas import tpu as pltpu


# ------------------------------ fused MHA kernel ------------------------------
def _mha_kernel(q_ref, k_ref, v_ref, wq_ref, wk_ref, wv_ref, wo_ref, b_ref,
                o_ref, ctx_ref, *, heads, head_dim):
    # Refs (batch dim squeezed): q/k/v (L, E); wq/wk/wv block-diag (E, E),
    # already transposed to `x @ W` layout with 1/sqrt(D) folded into wq;
    # wo (E, E) = W_out.T; b (1, E); ctx_ref (L, E) VMEM scratch.
    D = head_dim

    # Fused per-head projections: one lane-dense MXU call per input
    # (block-diagonal weights, contraction dim E) instead of `heads` tiny
    # (D, D) matmuls.
    qp = jnp.dot(q_ref[...], wq_ref[...], preferred_element_type=jnp.float32)
    kp = jnp.dot(k_ref[...], wk_ref[...], preferred_element_type=jnp.float32)
    vp = jnp.dot(v_ref[...], wv_ref[...], preferred_element_type=jnp.float32)

    for h in range(heads):                               # static, unrolled
        sl = slice(h * D, (h + 1) * D)

        # scores[q, k] = sum_d qp[q, hD+d] * kp[k, hD+d]  (MXU, no .T;
        # the 1/sqrt(D) scale is already inside qp via the wrapper)
        s = lax.dot_general(
            qp[:, sl], kp[:, sl],
            dimension_numbers=(((1,), (1,)), ((), ())),
            preferred_element_type=jnp.float32,
        )

        # numerically stable softmax (f32 statistics, EUP reciprocal)
        s = s - jnp.max(s, axis=-1, keepdims=True)
        p = jnp.exp(s)
        p = p * pl.reciprocal(jnp.sum(p, axis=-1, keepdims=True), approx=True)

        # per-head context, staged into the lane-dense (L, E) scratch
        ctx_ref[:, sl] = jnp.dot(p, vp[:, sl],
                                 preferred_element_type=jnp.float32)

    # fused output projection: one lane-dense MXU matmul (contraction dim E)
    o_ref[...] = (jnp.dot(ctx_ref[...], wo_ref[...],
                          preferred_element_type=jnp.float32) + b_ref[...])


# ------------------------------ python wrapper ------------------------------
def multi_head_attention(key, query, value, params, *, heads):
    """Pallas equivalent of MultiHeadAttention.forward (mask=None).

    key, query, value: (B, L, E) float32 with E = heads * head_dim.
    params: 'wq','wk','wv' (D, D), 'w_out' (E, E), 'b_out' (E,)
            in PyTorch nn.Linear layout (out_features, in_features).
    """
    B, L, E = query.shape
    assert key.shape == query.shape == value.shape
    D = E // heads
    H = heads
    scale = 1.0 / sqrt(D)

    # One-time wrapper-side layout plumbing (no per-step cost):
    #  * pre-transpose weights so the kernel computes x @ W (no in-kernel .T)
    #  * expand per-head (D, D) weights to block-diagonal (E, E) so each
    #    projection is a single lane-dense matmul
    #  * fold the 1/sqrt(D) score scale into the Q projection weight.
    eye = jnp.eye(H, dtype=jnp.float32)
    wq_full = jnp.kron(eye, params["wq"].T) * scale     # (E, E)
    wk_full = jnp.kron(eye, params["wk"].T)             # (E, E)
    wv_full = jnp.kron(eye, params["wv"].T)             # (E, E)
    wo_t = params["w_out"].T                            # (E, E)  y = x @ W.T
    bias2d = params["b_out"].reshape(1, E)

    act_spec = pl.BlockSpec((None, L, E), lambda b: (b, 0, 0))
    w_spec = pl.BlockSpec((E, E), lambda b: (0, 0))
    b_spec = pl.BlockSpec((1, E), lambda b: (0, 0))

    kernel = functools.partial(_mha_kernel, heads=H, head_dim=D)

    out = pl.pallas_call(
        kernel,
        out_shape=jax.ShapeDtypeStruct((B, L, E), jnp.float32),
        grid=(B,),
        in_specs=[
            act_spec,   # query
            act_spec,   # key
            act_spec,   # value
            w_spec,     # wq (block-diag, pre-transposed, pre-scaled)
            w_spec,     # wk (block-diag, pre-transposed)
            w_spec,     # wv (block-diag, pre-transposed)
            w_spec,     # w_out.T
            b_spec,     # bias
        ],
        out_specs=act_spec,
        scratch_shapes=[pltpu.VMEM((L, E), jnp.float32)],   # merged-head ctx
        compiler_params=pltpu.CompilerParams(
            dimension_semantics=("parallel",)),
    )(query, key, value, wq_full, wk_full, wv_full, wo_t, bias2d)

    return out


# ------------------------------ reference (jnp) ------------------------------
def _reference(key, query, value, params, *, heads):
    B, L, E = query.shape
    D = E // heads
    k = key.reshape(B, L, heads, D) @ params["wk"].T
    q = query.reshape(B, L, heads, D) @ params["wq"].T
    v = value.reshape(B, L, heads, D) @ params["wv"].T
    product = jnp.einsum("bqhd,bkhd->bhqk", q, k) / sqrt(D)
    scores = jax.nn.softmax(product, axis=-1)
    out = jnp.einsum("nhql,nlhd->nqhd", scores, v).reshape(B, L, heads * D)
    return out @ params["w_out"].T + params["b_out"]


if __name__ == "__main__":
    B, L = 2, 8
    heads, head_dim = 4, 8
    E = heads * head_dim  # 32

    root = jax.random.PRNGKey(0)
    k_q, k_k, k_v, k_wq, k_wk, k_wv, k_wo, k_bo = jax.random.split(root, 8)

    key_x = jax.random.normal(k_k, (B, L, E), dtype=jnp.float32)
    query_x = jax.random.normal(k_q, (B, L, E), dtype=jnp.float32)
    value_x = jax.random.normal(k_v, (B, L, E), dtype=jnp.float32)

    params = {
        "wq": jax.random.normal(k_wq, (head_dim, head_dim), jnp.float32) * 0.1,
        "wk": jax.random.normal(k_wk, (head_dim, head_dim), jnp.float32) * 0.1,
        "wv": jax.random.normal(k_wv, (head_dim, head_dim), jnp.float32) * 0.1,
        "w_out": jax.random.normal(k_wo, (E, E), jnp.float32) * 0.1,
        "b_out": jax.random.normal(k_bo, (E,), jnp.float32) * 0.1,
    }

    out = multi_head_attention(key_x, query_x, value_x, params, heads=heads)
    out = jax.block_until_ready(out)

    ref = _reference(key_x, query_x, value_x, params, heads=heads)
    assert out.shape == (B, L, E)
    # tolerance accounts for the approximate (EUP) softmax reciprocal
    assert jnp.allclose(out, ref, atol=1e-3, rtol=1e-3), "mismatch vs reference"

    print("KERNEL_OK")
</pallas_src>

<mosaic_0001>
module attributes {stable_mosaic.version = 11 : i64} {
  func.func @_mha_kernel(%arg0: i32, %arg1: memref<1x8x32xf32, #tpu.memory_space<vmem>>, %arg2: memref<1x8x32xf32, #tpu.memory_space<vmem>>, %arg3: memref<1x8x32xf32, #tpu.memory_space<vmem>>, %arg4: memref<32x32xf32, #tpu.memory_space<vmem>>, %arg5: memref<32x32xf32, #tpu.memory_space<vmem>>, %arg6: memref<32x32xf32, #tpu.memory_space<vmem>>, %arg7: memref<32x32xf32, #tpu.memory_space<vmem>>, %arg8: memref<1x32xf32, #tpu.memory_space<vmem>>, %arg9: memref<1x8x32xf32, #tpu.memory_space<vmem>>, %arg10: memref<8x32xf32, #tpu.memory_space<vmem>>) attributes {dimension_semantics = [#tpu.dimension_semantics<parallel>], iteration_bounds = array<i64: 2>, scalar_prefetch = 0 : i64, scratch_operands = 1 : i64, tpu.core_type = #tpu.core_type<tc>, window_params = [{transform_indices = @transform_0, window_bounds = array<i64: 1, 8, 32>}, {transform_indices = @transform_1, window_bounds = array<i64: 1, 8, 32>}, {transform_indices = @transform_2, window_bounds = array<i64: 1, 8, 32>}, {pipeline_mode = #tpu.pipeline_mode<synchronous>, transform_indices = @transform_3, window_bounds = array<i64: 32, 32>}, {pipeline_mode = #tpu.pipeline_mode<synchronous>, transform_indices = @transform_4, window_bounds = array<i64: 32, 32>}, {pipeline_mode = #tpu.pipeline_mode<synchronous>, transform_indices = @transform_5, window_bounds = array<i64: 32, 32>}, {pipeline_mode = #tpu.pipeline_mode<synchronous>, transform_indices = @transform_6, window_bounds = array<i64: 32, 32>}, {pipeline_mode = #tpu.pipeline_mode<synchronous>, transform_indices = @transform_7, window_bounds = array<i64: 1, 32>}, {transform_indices = @transform_8, window_bounds = array<i64: 1, 8, 32>}]} {
    %c0 = arith.constant 0 : index
    %c0_0 = arith.constant 0 : index
    %c0_1 = arith.constant 0 : index
    %0 = vector.load %arg1[%c0, %c0_0, %c0_1] : memref<1x8x32xf32, #tpu.memory_space<vmem>>, vector<1x8x32xf32>
    %1 = vector.shape_cast %0 : vector<1x8x32xf32> to vector<8x32xf32>
    %c0_2 = arith.constant 0 : index
    %c0_3 = arith.constant 0 : index
    %2 = vector.load %arg4[%c0_2, %c0_3] : memref<32x32xf32, #tpu.memory_space<vmem>>, vector<32x32xf32>
    %cst = arith.constant dense<0.000000e+00> : vector<8x32xf32>
    %3 = tpu.matmul %1, %2, %cst {dimension_numbers = #tpu.dot_dimension_numbers<[1], [0], [0], [1], [0, 0, 1, 1], [], []>} : vector<8x32xf32>, vector<32x32xf32>, vector<8x32xf32> -> vector<8x32xf32>
    %c0_4 = arith.constant 0 : index
    %c0_5 = arith.constant 0 : index
    %c0_6 = arith.constant 0 : index
    %4 = vector.load %arg2[%c0_4, %c0_5, %c0_6] : memref<1x8x32xf32, #tpu.memory_space<vmem>>, vector<1x8x32xf32>
    %5 = vector.shape_cast %4 : vector<1x8x32xf32> to vector<8x32xf32>
    %c0_7 = arith.constant 0 : index
    %c0_8 = arith.constant 0 : index
    %6 = vector.load %arg5[%c0_7, %c0_8] : memref<32x32xf32, #tpu.memory_space<vmem>>, vector<32x32xf32>
    %cst_9 = arith.constant dense<0.000000e+00> : vector<8x32xf32>
    %7 = tpu.matmul %5, %6, %cst_9 {dimension_numbers = #tpu.dot_dimension_numbers<[1], [0], [0], [1], [0, 0, 1, 1], [], []>} : vector<8x32xf32>, vector<32x32xf32>, vector<8x32xf32> -> vector<8x32xf32>
    %c0_10 = arith.constant 0 : index
    %c0_11 = arith.constant 0 : index
    %c0_12 = arith.constant 0 : index
    %8 = vector.load %arg3[%c0_10, %c0_11, %c0_12] : memref<1x8x32xf32, #tpu.memory_space<vmem>>, vector<1x8x32xf32>
    %9 = vector.shape_cast %8 : vector<1x8x32xf32> to vector<8x32xf32>
    %c0_13 = arith.constant 0 : index
    %c0_14 = arith.constant 0 : index
    %10 = vector.load %arg6[%c0_13, %c0_14] : memref<32x32xf32, #tpu.memory_space<vmem>>, vector<32x32xf32>
    %cst_15 = arith.constant dense<0.000000e+00> : vector<8x32xf32>
    %11 = tpu.matmul %9, %10, %cst_15 {dimension_numbers = #tpu.dot_dimension_numbers<[1], [0], [0], [1], [0, 0, 1, 1], [], []>} : vector<8x32xf32>, vector<32x32xf32>, vector<8x32xf32> -> vector<8x32xf32>
    %12 = vector.extract_strided_slice %3 {offsets = [0, 0], sizes = [8, 8], strides = [1, 1]} : vector<8x32xf32> to vector<8x8xf32>
    %13 = vector.extract_strided_slice %7 {offsets = [0, 0], sizes = [8, 8], strides = [1, 1]} : vector<8x32xf32> to vector<8x8xf32>
    %cst_16 = arith.constant dense<0.000000e+00> : vector<8x8xf32>
    %14 = tpu.matmul %12, %13, %cst_16 {dimension_numbers = #tpu.dot_dimension_numbers<[1], [1], [0], [0], [0, 0, 1, 0], [], []>} : vector<8x8xf32>, vector<8x8xf32>, vector<8x8xf32> -> vector<8x8xf32>
    %cst_17 = arith.constant dense<0xFF800000> : vector<8xf32>
    %15 = vector.multi_reduction <maximumf>, %14, %cst_17 [1] : vector<8x8xf32> to vector<8xf32>
    %16 = vector.shape_cast %15 : vector<8xf32> to vector<8x1xf32>
    %17 = vector.broadcast %16 : vector<8x1xf32> to vector<8x8xf32>
    %18 = arith.subf %14, %17 : vector<8x8xf32>
    %19 = math.exp %18 : vector<8x8xf32>
    %cst_18 = arith.constant dense<0.000000e+00> : vector<8xf32>
    %20 = vector.multi_reduction <add>, %19, %cst_18 [1] : vector<8x8xf32> to vector<8xf32>
    %21 = vector.shape_cast %20 : vector<8xf32> to vector<8x1xf32>
    %22 = tpu.reciprocal %21 {approx = true} : vector<8x1xf32> -> vector<8x1xf32>
    %23 = vector.broadcast %22 : vector<8x1xf32> to vector<8x8xf32>
    %24 = arith.mulf %19, %23 : vector<8x8xf32>
    %25 = vector.extract_strided_slice %11 {offsets = [0, 0], sizes = [8, 8], strides = [1, 1]} : vector<8x32xf32> to vector<8x8xf32>
    %cst_19 = arith.constant dense<0.000000e+00> : vector<8x8xf32>
    %26 = tpu.matmul %24, %25, %cst_19 {dimension_numbers = #tpu.dot_dimension_numbers<[1], [0], [0], [1], [0, 0, 1, 1], [], []>} : vector<8x8xf32>, vector<8x8xf32>, vector<8x8xf32> -> vector<8x8xf32>
    %c0_20 = arith.constant 0 : index
    %c0_21 = arith.constant 0 : index
    %27 = vector.load %arg10[%c0_20, %c0_21] : memref<8x32xf32, #tpu.memory_space<vmem>>, vector<8x8xf32>
    tpu.vector_store %arg10[%c0_20, %c0_21], %26 {strides = array<i32>} : memref<8x32xf32, #tpu.memory_space<vmem>>, vector<8x8xf32>,
    %28 = vector.extract_strided_slice %3 {offsets = [0, 8], sizes = [8, 8], strides = [1, 1]} : vector<8x32xf32> to vector<8x8xf32>
    %29 = vector.extract_strided_slice %7 {offsets = [0, 8], sizes = [8, 8], strides = [1, 1]} : vector<8x32xf32> to vector<8x8xf32>
    %cst_22 = arith.constant dense<0.000000e+00> : vector<8x8xf32>
    %30 = tpu.matmul %28, %29, %cst_22 {dimension_numbers = #tpu.dot_dimension_numbers<[1], [1], [0], [0], [0, 0, 1, 0], [], []>} : vector<8x8xf32>, vector<8x8xf32>, vector<8x8xf32> -> vector<8x8xf32>
    %cst_23 = arith.constant dense<0xFF800000> : vector<8xf32>
    %31 = vector.multi_reduction <maximumf>, %30, %cst_23 [1] : vector<8x8xf32> to vector<8xf32>
    %32 = vector.shape_cast %31 : vector<8xf32> to vector<8x1xf32>
    %33 = vector.broadcast %32 : vector<8x1xf32> to vector<8x8xf32>
    %34 = arith.subf %30, %33 : vector<8x8xf32>
    %35 = math.exp %34 : vector<8x8xf32>
    %cst_24 = arith.constant dense<0.000000e+00> : vector<8xf32>
    %36 = vector.multi_reduction <add>, %35, %cst_24 [1] : vector<8x8xf32> to vector<8xf32>
    %37 = vector.shape_cast %36 : vector<8xf32> to vector<8x1xf32>
    %38 = tpu.reciprocal %37 {approx = true} : vector<8x1xf32> -> vector<8x1xf32>
    %39 = vector.broadcast %38 : vector<8x1xf32> to vector<8x8xf32>
    %40 = arith.mulf %35, %39 : vector<8x8xf32>
    %41 = vector.extract_strided_slice %11 {offsets = [0, 8], sizes = [8, 8], strides = [1, 1]} : vector<8x32xf32> to vector<8x8xf32>
    %cst_25 = arith.constant dense<0.000000e+00> : vector<8x8xf32>
    %42 = tpu.matmul %40, %41, %cst_25 {dimension_numbers = #tpu.dot_dimension_numbers<[1], [0], [0], [1], [0, 0, 1, 1], [], []>} : vector<8x8xf32>, vector<8x8xf32>, vector<8x8xf32> -> vector<8x8xf32>
    %c0_26 = arith.constant 0 : index
    %c8 = arith.constant 8 : index
    %43 = vector.load %arg10[%c0_26, %c8] : memref<8x32xf32, #tpu.memory_space<vmem>>, vector<8x8xf32>
    tpu.vector_store %arg10[%c0_26, %c8], %42 {strides = array<i32>} : memref<8x32xf32, #tpu.memory_space<vmem>>, vector<8x8xf32>,
    %44 = vector.extract_strided_slice %3 {offsets = [0, 16], sizes = [8, 8], strides = [1, 1]} : vector<8x32xf32> to vector<8x8xf32>
    %45 = vector.extract_strided_slice %7 {offsets = [0, 16], sizes = [8, 8], strides = [1, 1]} : vector<8x32xf32> to vector<8x8xf32>
    %cst_27 = arith.constant dense<0.000000e+00> : vector<8x8xf32>
    %46 = tpu.matmul %44, %45, %cst_27 {dimension_numbers = #tpu.dot_dimension_numbers<[1], [1], [0], [0], [0, 0, 1, 0], [], []>} : vector<8x8xf32>, vector<8x8xf32>, vector<8x8xf32> -> vector<8x8xf32>
    %cst_28 = arith.constant dense<0xFF800000> : vector<8xf32>
    %47 = vector.multi_reduction <maximumf>, %46, %cst_28 [1] : vector<8x8xf32> to vector<8xf32>
    %48 = vector.shape_cast %47 : vector<8xf32> to vector<8x1xf32>
    %49 = vector.broadcast %48 : vector<8x1xf32> to vector<8x8xf32>
    %50 = arith.subf %46, %49 : vector<8x8xf32>
    %51 = math.exp %50 : vector<8x8xf32>
    %cst_29 = arith.constant dense<0.000000e+00> : vector<8xf32>
    %52 = vector.multi_reduction <add>, %51, %cst_29 [1] : vector<8x8xf32> to vector<8xf32>
    %53 = vector.shape_cast %52 : vector<8xf32> to vector<8x1xf32>
    %54 = tpu.reciprocal %53 {approx = true} : vector<8x1xf32> -> vector<8x1xf32>
    %55 = vector.broadcast %54 : vector<8x1xf32> to vector<8x8xf32>
    %56 = arith.mulf %51, %55 : vector<8x8xf32>
    %57 = vector.extract_strided_slice %11 {offsets = [0, 16], sizes = [8, 8], strides = [1, 1]} : vector<8x32xf32> to vector<8x8xf32>
    %cst_30 = arith.constant dense<0.000000e+00> : vector<8x8xf32>
    %58 = tpu.matmul %56, %57, %cst_30 {dimension_numbers = #tpu.dot_dimension_numbers<[1], [0], [0], [1], [0, 0, 1, 1], [], []>} : vector<8x8xf32>, vector<8x8xf32>, vector<8x8xf32> -> vector<8x8xf32>
    %c0_31 = arith.constant 0 : index
    %c16 = arith.constant 16 : index
    %59 = vector.load %arg10[%c0_31, %c16] : memref<8x32xf32, #tpu.memory_space<vmem>>, vector<8x8xf32>
    tpu.vector_store %arg10[%c0_31, %c16], %58 {strides = array<i32>} : memref<8x32xf32, #tpu.memory_space<vmem>>, vector<8x8xf32>,
    %60 = vector.extract_strided_slice %3 {offsets = [0, 24], sizes = [8, 8], strides = [1, 1]} : vector<8x32xf32> to vector<8x8xf32>
    %61 = vector.extract_strided_slice %7 {offsets = [0, 24], sizes = [8, 8], strides = [1, 1]} : vector<8x32xf32> to vector<8x8xf32>
    %cst_32 = arith.constant dense<0.000000e+00> : vector<8x8xf32>
    %62 = tpu.matmul %60, %61, %cst_32 {dimension_numbers = #tpu.dot_dimension_numbers<[1], [1], [0], [0], [0, 0, 1, 0], [], []>} : vector<8x8xf32>, vector<8x8xf32>, vector<8x8xf32> -> vector<8x8xf32>
    %cst_33 = arith.constant dense<0xFF800000> : vector<8xf32>
    %63 = vector.multi_reduction <maximumf>, %62, %cst_33 [1] : vector<8x8xf32> to vector<8xf32>
    %64 = vector.shape_cast %63 : vector<8xf32> to vector<8x1xf32>
    %65 = vector.broadcast %64 : vector<8x1xf32> to vector<8x8xf32>
    %66 = arith.subf %62, %65 : vector<8x8xf32>
    %67 = math.exp %66 : vector<8x8xf32>
    %cst_34 = arith.constant dense<0.000000e+00> : vector<8xf32>
    %68 = vector.multi_reduction <add>, %67, %cst_34 [1] : vector<8x8xf32> to vector<8xf32>
    %69 = vector.shape_cast %68 : vector<8xf32> to vector<8x1xf32>
    %70 = tpu.reciprocal %69 {approx = true} : vector<8x1xf32> -> vector<8x1xf32>
    %71 = vector.broadcast %70 : vector<8x1xf32> to vector<8x8xf32>
    %72 = arith.mulf %67, %71 : vector<8x8xf32>
    %73 = vector.extract_strided_slice %11 {offsets = [0, 24], sizes = [8, 8], strides = [1, 1]} : vector<8x32xf32> to vector<8x8xf32>
    %cst_35 = arith.constant dense<0.000000e+00> : vector<8x8xf32>
    %74 = tpu.matmul %72, %73, %cst_35 {dimension_numbers = #tpu.dot_dimension_numbers<[1], [0], [0], [1], [0, 0, 1, 1], [], []>} : vector<8x8xf32>, vector<8x8xf32>, vector<8x8xf32> -> vector<8x8xf32>
    %c0_36 = arith.constant 0 : index
    %c24 = arith.constant 24 : index
    %75 = vector.load %arg10[%c0_36, %c24] : memref<8x32xf32, #tpu.memory_space<vmem>>, vector<8x8xf32>
    tpu.vector_store %arg10[%c0_36, %c24], %74 {strides = array<i32>} : memref<8x32xf32, #tpu.memory_space<vmem>>, vector<8x8xf32>,
    %c0_37 = arith.constant 0 : index
    %c0_38 = arith.constant 0 : index
    %76 = vector.load %arg10[%c0_37, %c0_38] : memref<8x32xf32, #tpu.memory_space<vmem>>, vector<8x32xf32>
    %c0_39 = arith.constant 0 : index
    %c0_40 = arith.constant 0 : index
    %77 = vector.load %arg7[%c0_39, %c0_40] : memref<32x32xf32, #tpu.memory_space<vmem>>, vector<32x32xf32>
    %cst_41 = arith.constant dense<0.000000e+00> : vector<8x32xf32>
    %78 = tpu.matmul %76, %77, %cst_41 {dimension_numbers = #tpu.dot_dimension_numbers<[1], [0], [0], [1], [0, 0, 1, 1], [], []>} : vector<8x32xf32>, vector<32x32xf32>, vector<8x32xf32> -> vector<8x32xf32>
    %c0_42 = arith.constant 0 : index
    %c0_43 = arith.constant 0 : index
    %79 = vector.load %arg8[%c0_42, %c0_43] : memref<1x32xf32, #tpu.memory_space<vmem>>, vector<1x32xf32>
    %80 = vector.broadcast %79 : vector<1x32xf32> to vector<8x32xf32>
    %81 = arith.addf %78, %80 : vector<8x32xf32>
    %c0_44 = arith.constant 0 : index
    %c0_45 = arith.constant 0 : index
    %c0_46 = arith.constant 0 : index
    %82 = vector.load %arg9[%c0_44, %c0_45, %c0_46] : memref<1x8x32xf32, #tpu.memory_space<vmem>>, vector<1x8x32xf32>
    %83 = vector.shape_cast %82 : vector<1x8x32xf32> to vector<8x32xf32>
    %84 = vector.shape_cast %81 : vector<8x32xf32> to vector<1x8x32xf32>
    tpu.vector_store %arg9[%c0_44, %c0_45, %c0_46], %84 {strides = array<i32>} : memref<1x8x32xf32, #tpu.memory_space<vmem>>, vector<1x8x32xf32>,
    return
  }
  func.func @transform_0(%arg0: i32) -> (i32, i32, i32) {
    %c0_i32 = arith.constant 0 : i32
    %c0_i32_0 = arith.constant 0 : i32
    %c0_i32_1 = arith.constant 0 : i32
    return %arg0, %c0_i32, %c0_i32_0 : i32, i32, i32
  }
  func.func @transform_1(%arg0: i32) -> (i32, i32, i32) {
    %c0_i32 = arith.constant 0 : i32
    %c0_i32_0 = arith.constant 0 : i32
    %c0_i32_1 = arith.constant 0 : i32
    return %arg0, %c0_i32, %c0_i32_0 : i32, i32, i32
  }
  func.func @transform_2(%arg0: i32) -> (i32, i32, i32) {
    %c0_i32 = arith.constant 0 : i32
    %c0_i32_0 = arith.constant 0 : i32
    %c0_i32_1 = arith.constant 0 : i32
    return %arg0, %c0_i32, %c0_i32_0 : i32, i32, i32
  }
  func.func @transform_3(%arg0: i32) -> (i32, i32) {
    %c0_i32 = arith.constant 0 : i32
    %c0_i32_0 = arith.constant 0 : i32
    %c0_i32_1 = arith.constant 0 : i32
    return %c0_i32, %c0_i32_0 : i32, i32
  }
  func.func @transform_4(%arg0: i32) -> (i32, i32) {
    %c0_i32 = arith.constant 0 : i32
    %c0_i32_0 = arith.constant 0 : i32
    %c0_i32_1 = arith.constant 0 : i32
    return %c0_i32, %c0_i32_0 : i32, i32
  }
  func.func @transform_5(%arg0: i32) -> (i32, i32) {
    %c0_i32 = arith.constant 0 : i32
    %c0_i32_0 = arith.constant 0 : i32
    %c0_i32_1 = arith.constant 0 : i32
    return %c0_i32, %c0_i32_0 : i32, i32
  }
  func.func @transform_6(%arg0: i32) -> (i32, i32) {
    %c0_i32 = arith.constant 0 : i32
    %c0_i32_0 = arith.constant 0 : i32
    %c0_i32_1 = arith.constant 0 : i32
    return %c0_i32, %c0_i32_0 : i32, i32
  }
  func.func @transform_7(%arg0: i32) -> (i32, i32) {
    %c0_i32 = arith.constant 0 : i32
    %c0_i32_0 = arith.constant 0 : i32
    %c0_i32_1 = arith.constant 0 : i32
    return %c0_i32, %c0_i32_0 : i32, i32
  }
  func.func @transform_8(%arg0: i32) -> (i32, i32, i32) {
    %c0_i32 = arith.constant 0 : i32
    %c0_i32_0 = arith.constant 0 : i32
    %c0_i32_1 = arith.constant 0 : i32
    return %arg0, %c0_i32, %c0_i32_0 : i32, i32, i32
  }
}

</mosaic_0001>

<llo_original>
// kernel: tpu_custom_call.1
$region0: #{tpu_custom_call.1}
  #allocation0 [shape = 'u32[]', space=smem, size = 0x4, offset = 0x4, fixed_abs, tag = 'smem constant byte address 0x4 - core index']
  #allocation1 [shape = 'u32[144,128]{1,0:T(1,128)}', space=vmem, size = 0x12000, scoped, tag = 'internal scratch']
  #allocation2 [shape = 'f32[8,32]{1,0:T(8,128)}', space=vmem, size = 0x1000, scoped, tag = 'scratch operand']
  %s0 = inlined_call_operand.hbm [shape: f32[2,8,32], index: 0, kind: input, shape index: {}]
  %s1 = inlined_call_operand.hbm [shape: f32[2,8,32], index: 1, kind: input, shape index: {}]
  %s2 = inlined_call_operand.hbm [shape: f32[2,8,32], index: 2, kind: input, shape index: {}]
  %s3 = inlined_call_operand.hbm [shape: f32[32,32], index: 3, kind: input, shape index: {}]
  %s4 = inlined_call_operand.hbm [shape: f32[32,32], index: 4, kind: input, shape index: {}]
  %s5 = inlined_call_operand.hbm [shape: f32[32,32], index: 5, kind: input, shape index: {}]
  %s6 = inlined_call_operand.hbm [shape: f32[32,32], index: 6, kind: input, shape index: {}]
  %s7 = inlined_call_operand.vmem [shape: f32[1,32], index: 7, kind: input, shape index: {}]
  %s8 = inlined_call_operand.hbm [shape: f32[2,8,32], index: 8, kind: output, shape index: {}]
  %s9 = sld [smem:[#allocation0]]
  $region93: #{tpu_custom_call.1} parent=0
    _
  %s11 = ssub.s32 1, %s9
  %s12 = scalar_select 0, %s11, %s9
  $region1: #{tpu_custom_call.1} parent=0
    #allocation3 [shape = 'u8[8192]{0}', space=vmem, size = 0x2000, scoped, tag = 'input window, operand 0']
    #allocation4 [shape = 's32[2]{0}', space=sflag, size = 0x8, scoped, tag = 'scoped memory for tpu_custom_call.1']
    #allocation5 [shape = 's32[2]{0}', space=sflag, size = 0x8, scoped, tag = 'scoped memory for tpu_custom_call.1']
    #allocation6 [shape = 'u8[8192]{0}', space=vmem, size = 0x2000, scoped, tag = 'input window, operand 1']
    #allocation7 [shape = 's32[2]{0}', space=sflag, size = 0x8, scoped, tag = 'scoped memory for tpu_custom_call.1']
    #allocation8 [shape = 'u8[8192]{0}', space=vmem, size = 0x2000, scoped, tag = 'input window, operand 2']
    #allocation9 [shape = 'u8[16384]{0}', space=vmem, size = 0x4000, scoped, tag = 'input window, operand 3, single buffered']
    #allocation10 [shape = 's32[1]{0}', space=sflag, size = 0x4, scoped, tag = 'scoped memory for tpu_custom_call.1']
    #allocation11 [shape = 'u8[16384]{0}', space=vmem, size = 0x4000, scoped, tag = 'input window, operand 4, single buffered']
    #allocation12 [shape = 'u8[16384]{0}', space=vmem, size = 0x4000, scoped, tag = 'input window, operand 5, single buffered']
    #allocation13 [shape = 's32[1]{0}', space=sflag, size = 0x4, scoped, tag = 'scoped memory for tpu_custom_call.1']
    #allocation14 [shape = 'u8[16384]{0}', space=vmem, size = 0x4000, scoped, tag = 'input window, operand 6, single buffered']
    #allocation15 [shape = 'u8[8192]{0}', space=vmem, size = 0x2000, scoped, tag = 'output window, operand 0']
    %13 = vsyncpa [#allocation4], 0
    %s14 = scalar_lea.sflag [#allocation4], 1
    %15 = vsyncpa %s14, 0
    %16 = vsyncpa [#allocation7], 0
    %s17 = scalar_lea.sflag [#allocation7], 1
    %18 = vsyncpa %s17, 0
    %19 = vsyncpa [#allocation10], 0
    %20 = vsyncpa [#allocation13], 0
    %21 = vsyncpa [#allocation5], 0
    %s22 = scalar_lea.sflag [#allocation5], 1
    %23 = vsyncpa %s22, 0
    loop: start=0, step=1, limit=4
    $region2: #{tpu_custom_call.1} parent=1 // loop_pre_header
      _
    $region3: #{tpu_custom_call.1} parent=1 // loop_header
      %s25 = sphi 0, %s29
      %p26 = scmp.ge.s32.totalorder %s25, 4
      %s35 = sphi 0, %s37
      %s38 = sphi 0, %s35
      %s39 = sphi 0, %s38
      %s55 = sphi 0, %s39
      %s61 = sphi 0, %s63
      %s64 = sphi 0, %s61
      %s65 = sphi 0, %s64
      %s81 = sphi 0, %s65
      %s87 = sphi 0, %s89
      %s90 = sphi 0, %s87
      %s91 = sphi 0, %s90
      %s107 = sphi 0, %s91
      %s111 = sphi 0, %s111
      %s113 = sphi 0, %s111
      %s114 = sphi 0, %s113
      %s128 = sphi 0, %s114
      %s132 = sphi 0, %s132
      %s134 = sphi 0, %s132
      %s135 = sphi 0, %s134
      %s149 = sphi 0, %s135
      %s153 = sphi 0, %s153
      %s155 = sphi 0, %s153
      %s156 = sphi 0, %s155
      %s170 = sphi 0, %s156
      %s174 = sphi 0, %s174
      %s176 = sphi 0, %s174
      %s177 = sphi 0, %s176
      %s191 = sphi 0, %s177
      %s195 = sphi 0, %s195
      %s197 = sphi 0, %s195
      %s198 = sphi 0, %s197
      %s212 = sphi 0, %s198
      %s218 = sphi 0, %s220
      %s221 = sphi 0, %s218
      %s222 = sphi 0, %s221
      %s238 = sphi 0, %s222
    $region4: #{tpu_custom_call.1} parent=1 // loop_header_branch
      %28 = sbr.rel (%p26) target = $region8
    $region5: #{tpu_custom_call.1} parent=1 // loop_body
      %s30 = ssub.s32 %s25, 1
      %s31 = ssub.s32 %s25, 2
      %s32 = sadd.s32 %s25, 1
      %s33 = ssub.s32 %s25, %s32
      %p34 = scmp.eq.s32.totalorder %s33, 0
      %s36 = sadd.s32 %s35, 1
      %s37 = scalar_select %p34, %s35, %s36
      %p40 = pneg %p34
      %p41 = scmp.eq.s32.totalorder %s25, 1
      %p42 = por %p40, %p41
      %p43 = scmp.ne.s32.totalorder %s35, %s38
      %p44 = scmp.eq.s32.totalorder %s25, 0
      %p45 = por %p43, %p44
      %p46 = scmp.ne.s32.totalorder %s35, %s38
      %p47 = scmp.eq.s32.totalorder %s30, 1
      %p48 = por %p46, %p47
      %p49 = scmp.ne.s32.totalorder %s38, %s39
      %p50 = scmp.eq.s32.totalorder %s30, 0
      %p51 = por %p49, %p50
      %p52 = scmp.ne.s32.totalorder %s38, %s39
      %p53 = scmp.eq.s32.totalorder %s31, 1
      %p54 = por %p52, %p53
      %p56 = scmp.ne.s32.totalorder %s39, %s55
      %p57 = scmp.eq.s32.totalorder %s31, 0
      %p58 = por %p56, %p57
      %s59 = ssub.s32 %s25, %s32
      %p60 = scmp.eq.s32.totalorder %s59, 0
      %s62 = sadd.s32 %s61, 1
      %s63 = scalar_select %p60, %s61, %s62
      %p66 = pneg %p60
      %p67 = scmp.eq.s32.totalorder %s25, 1
      %p68 = por %p66, %p67
      %p69 = scmp.ne.s32.totalorder %s61, %s64
      %p70 = scmp.eq.s32.totalorder %s25, 0
      %p71 = por %p69, %p70
      %p72 = scmp.ne.s32.totalorder %s61, %s64
      %p73 = scmp.eq.s32.totalorder %s30, 1
      %p74 = por %p72, %p73
      %p75 = scmp.ne.s32.totalorder %s64, %s65
      %p76 = scmp.eq.s32.totalorder %s30, 0
      %p77 = por %p75, %p76
      %p78 = scmp.ne.s32.totalorder %s64, %s65
      %p79 = scmp.eq.s32.totalorder %s31, 1
      %p80 = por %p78, %p79
      %p82 = scmp.ne.s32.totalorder %s65, %s81
      %p83 = scmp.eq.s32.totalorder %s31, 0
      %p84 = por %p82, %p83
      %s85 = ssub.s32 %s25, %s32
      %p86 = scmp.eq.s32.totalorder %s85, 0
      %s88 = sadd.s32 %s87, 1
      %s89 = scalar_select %p86, %s87, %s88
      %p92 = pneg %p86
      %p93 = scmp.eq.s32.totalorder %s25, 1
      %p94 = por %p92, %p93
      %p95 = scmp.ne.s32.totalorder %s87, %s90
      %p96 = scmp.eq.s32.totalorder %s25, 0
      %p97 = por %p95, %p96
      %p98 = scmp.ne.s32.totalorder %s87, %s90
      %p99 = scmp.eq.s32.totalorder %s30, 1
      %p100 = por %p98, %p99
      %p101 = scmp.ne.s32.totalorder %s90, %s91
      %p102 = scmp.eq.s32.totalorder %s30, 0
      %p103 = por %p101, %p102
      %p104 = scmp.ne.s32.totalorder %s90, %s91
      %p105 = scmp.eq.s32.totalorder %s31, 1
      %p106 = por %p104, %p105
      %p108 = scmp.ne.s32.totalorder %s91, %s107
      %p109 = scmp.eq.s32.totalorder %s31, 0
      %p110 = por %p108, %p109
      %s112 = sadd.s32 %s111, 1
      %p115 = scmp.eq.s32.totalorder %s25, 1
      %p116 = scmp.ne.s32.totalorder %s111, %s113
      %p117 = scmp.eq.s32.totalorder %s25, 0
      %p118 = por %p116, %p117
      %p119 = scmp.ne.s32.totalorder %s111, %s113
      %p120 = scmp.eq.s32.totalorder %s30, 1
      %p121 = por %p119, %p120
      %p122 = scmp.ne.s32.totalorder %s113, %s114
      %p123 = scmp.eq.s32.totalorder %s30, 0
      %p124 = por %p122, %p123
      %p125 = scmp.ne.s32.totalorder %s113, %s114
      %p126 = scmp.eq.s32.totalorder %s31, 1
      %p127 = por %p125, %p126
      %p129 = scmp.ne.s32.totalorder %s114, %s128
      %p130 = scmp.eq.s32.totalorder %s31, 0
      %p131 = por %p129, %p130
      %s133 = sadd.s32 %s132, 1
      %p136 = scmp.eq.s32.totalorder %s25, 1
      %p137 = scmp.ne.s32.totalorder %s132, %s134
      %p138 = scmp.eq.s32.totalorder %s25, 0
      %p139 = por %p137, %p138
      %p140 = scmp.ne.s32.totalorder %s132, %s134
      %p141 = scmp.eq.s32.totalorder %s30, 1
      %p142 = por %p140, %p141
      %p143 = scmp.ne.s32.totalorder %s134, %s135
      %p144 = scmp.eq.s32.totalorder %s30, 0
      %p145 = por %p143, %p144
      %p146 = scmp.ne.s32.totalorder %s134, %s135
      %p147 = scmp.eq.s32.totalorder %s31, 1
      %p148 = por %p146, %p147
      %p150 = scmp.ne.s32.totalorder %s135, %s149
      %p151 = scmp.eq.s32.totalorder %s31, 0
      %p152 = por %p150, %p151
      %s154 = sadd.s32 %s153, 1
      %p157 = scmp.eq.s32.totalorder %s25, 1
      %p158 = scmp.ne.s32.totalorder %s153, %s155
      %p159 = scmp.eq.s32.totalorder %s25, 0
      %p160 = por %p158, %p159
      %p161 = scmp.ne.s32.totalorder %s153, %s155
      %p162 = scmp.eq.s32.totalorder %s30, 1
      %p163 = por %p161, %p162
      %p164 = scmp.ne.s32.totalorder %s155, %s156
      %p165 = scmp.eq.s32.totalorder %s30, 0
      %p166 = por %p164, %p165
      %p167 = scmp.ne.s32.totalorder %s155, %s156
      %p168 = scmp.eq.s32.totalorder %s31, 1
      %p169 = por %p167, %p168
      %p171 = scmp.ne.s32.totalorder %s156, %s170
      %p172 = scmp.eq.s32.totalorder %s31, 0
      %p173 = por %p171, %p172
      %s175 = sadd.s32 %s174, 1
      %p178 = scmp.eq.s32.totalorder %s25, 1
      %p179 = scmp.ne.s32.totalorder %s174, %s176
      %p180 = scmp.eq.s32.totalorder %s25, 0
      %p181 = por %p179, %p180
      %p182 = scmp.ne.s32.totalorder %s174, %s176
      %p183 = scmp.eq.s32.totalorder %s30, 1
      %p184 = por %p182, %p183
      %p185 = scmp.ne.s32.totalorder %s176, %s177
      %p186 = scmp.eq.s32.totalorder %s30, 0
      %p187 = por %p185, %p186
      %p188 = scmp.ne.s32.totalorder %s176, %s177
      %p189 = scmp.eq.s32.totalorder %s31, 1
      %p190 = por %p188, %p189
      %p192 = scmp.ne.s32.totalorder %s177, %s191
      %p193 = scmp.eq.s32.totalorder %s31, 0
      %p194 = por %p192, %p193
      %s196 = sadd.s32 %s195, 1
      %p199 = scmp.eq.s32.totalorder %s25, 1
      %p200 = scmp.ne.s32.totalorder %s195, %s197
      %p201 = scmp.eq.s32.totalorder %s25, 0
      %p202 = por %p200, %p201
      %p203 = scmp.ne.s32.totalorder %s195, %s197
      %p204 = scmp.eq.s32.totalorder %s30, 1
      %p205 = por %p203, %p204
      %p206 = scmp.ne.s32.totalorder %s197, %s198
      %p207 = scmp.eq.s32.totalorder %s30, 0
      %p208 = por %p206, %p207
      %p209 = scmp.ne.s32.totalorder %s197, %s198
      %p210 = scmp.eq.s32.totalorder %s31, 1
      %p211 = por %p209, %p210
      %p213 = scmp.ne.s32.totalorder %s198, %s212
      %p214 = scmp.eq.s32.totalorder %s31, 0
      %p215 = por %p213, %p214
      %s216 = ssub.s32 %s25, %s32
      %p217 = scmp.eq.s32.totalorder %s216, 0
      %s219 = sadd.s32 %s218, 1
      %s220 = scalar_select %p217, %s218, %s219
      %p223 = pneg %p217
      %p224 = scmp.eq.s32.totalorder %s25, 1
      %p225 = por %p223, %p224
      %p226 = scmp.ne.s32.totalorder %s218, %s221
      %p227 = scmp.eq.s32.totalorder %s25, 0
      %p228 = por %p226, %p227
      %p229 = scmp.ne.s32.totalorder %s218, %s221
      %p230 = scmp.eq.s32.totalorder %s30, 1
      %p231 = por %p229, %p230
      %p232 = scmp.ne.s32.totalorder %s221, %s222
      %p233 = scmp.eq.s32.totalorder %s30, 0
      %p234 = por %p232, %p233
      %p235 = scmp.ne.s32.totalorder %s221, %s222
      %p236 = scmp.eq.s32.totalorder %s31, 1
      %p237 = por %p235, %p236
      %p239 = scmp.ne.s32.totalorder %s222, %s238
      %p240 = scmp.eq.s32.totalorder %s31, 0
      %p241 = por %p239, %p240
      %p242 = scmp.le.s32.totalorder 1, %s25
      %p243 = scmp.lt.s32.totalorder %s25, 3
      %p244 = pnand %p242, %p243
      %p245 = pneg %p244
      // Predicated region
      $region9: #{tpu_custom_call.1} parent=5 // pred_check
        _
      $region10: #{tpu_custom_call.1} parent=5 // pred_check_branch
        %247 = sbr.rel (%p244) target = $region12
      $region11: #{tpu_custom_call.1} parent=5 // pred_region
        %s248 = ssub.s32 %s25, 1
        // Predicated region
        $region13: #{tpu_custom_call.1} parent=11 // pred_check
          %p249 = pneg %p124
        $region14: #{tpu_custom_call.1} parent=11 // pred_check_branch
          %251 = sbr.rel (%p249) target = $region16
        $region15: #{tpu_custom_call.1} parent=11 // pred_region
          %s253 = ssub.s32 512, 512
          %254 = vsyncadd [#allocation10], %s253
          %s255 = sshll.u32 [#allocation9], 4
          %s256 = int_to_ptr.vmem [resolvable:$true] %s255
          %261 = dma.hbm_to_vmem [thread:$0]  %s3, 512, %s256, [#allocation10], 128, 128, 8
        $region16: #{tpu_custom_call.1} parent=11 // pred_fallthru
          _
        // Predicated region
        $region17: #{tpu_custom_call.1} parent=11 // pred_check
          %p262 = pneg %p145
        $region18: #{tpu_custom_call.1} parent=11 // pred_check_branch
          %264 = sbr.rel (%p262) target = $region20
        $region19: #{tpu_custom_call.1} parent=11 // pred_region
          %s266 = ssub.s32 512, 512
          %267 = vsyncadd [#allocation10], %s266
          %s268 = sshll.u32 [#allocation11], 4
          %s269 = int_to_ptr.vmem [resolvable:$true] %s268
          %274 = dma.hbm_to_vmem [thread:$0]  %s4, 512, %s269, [#allocation10], 128, 128, 8
        $region20: #{tpu_custom_call.1} parent=11 // pred_fallthru
          _
        // Predicated region
        $region21: #{tpu_custom_call.1} parent=11 // pred_check
          %p275 = pneg %p166
        $region22: #{tpu_custom_call.1} parent=11 // pred_check_branch
          %277 = sbr.rel (%p275) target = $region24
        $region23: #{tpu_custom_call.1} parent=11 // pred_region
          %s279 = ssub.s32 512, 512
          %280 = vsyncadd [#allocation13], %s279
          %s281 = sshll.u32 [#allocation12], 4
          %s282 = int_to_ptr.vmem [resolvable:$true] %s281
          %287 = dma.hbm_to_vmem [thread:$0]  %s5, 512, %s282, [#allocation13], 128, 128, 8
        $region24: #{tpu_custom_call.1} parent=11 // pred_fallthru
          _
        // Predicated region
        $region25: #{tpu_custom_call.1} parent=11 // pred_check
          %p288 = pneg %p187
        $region26: #{tpu_custom_call.1} parent=11 // pred_check_branch
          %290 = sbr.rel (%p288) target = $region28
        $region27: #{tpu_custom_call.1} parent=11 // pred_region
          %s292 = ssub.s32 512, 512
          %293 = vsyncadd [#allocation13], %s292
          %s294 = sshll.u32 [#allocation14], 4
          %s295 = int_to_ptr.vmem [resolvable:$true] %s294
          %300 = dma.hbm_to_vmem [thread:$0]  %s6, 512, %s295, [#allocation13], 128, 128, 8
        $region28: #{tpu_custom_call.1} parent=11 // pred_fallthru
          _
        // Predicated region
        $region29: #{tpu_custom_call.1} parent=11 // pred_check
          %p301 = pneg %p208
        $region30: #{tpu_custom_call.1} parent=11 // pred_check_branch
          %303 = sbr.rel (%p301) target = $region32
        $region31: #{tpu_custom_call.1} parent=11 // pred_region
          _
        $region32: #{tpu_custom_call.1} parent=11 // pred_fallthru
          _
      $region12: #{tpu_custom_call.1} parent=5 // pred_fallthru
        _
      %p304 = scmp.lt.s32.totalorder %s25, 2
      // Predicated region
      $region33: #{tpu_custom_call.1} parent=5 // pred_check
        %p305 = pneg %p304
      $region34: #{tpu_custom_call.1} parent=5 // pred_check_branch
        %307 = sbr.rel (%p305) target = $region36
      $region35: #{tpu_custom_call.1} parent=5 // pred_region
        // Predicated region
        $region37: #{tpu_custom_call.1} parent=35 // pred_check
          %p308 = pneg %p45
        $region38: #{tpu_custom_call.1} parent=35 // pred_check_branch
          %310 = sbr.rel (%p308) target = $region40
        $region39: #{tpu_custom_call.1} parent=35 // pred_region
          %s311 = sand.u32 %s35, 1
          %s312 = scalar_lea.sflag [#allocation4], %s311
          %s313 = sand.u32 %s35, 1
          %s314 = smul.addr %s313, 8
          %s315 = scalar_lea.vmem [#allocation3], %s314
          %s317 = ssub.s32 128, 128
          %318 = vsyncadd %s312, %s317
          %s319 = smul.addr %s25, 128
          %s320 = scalar_lea.hbm %s0, %s319
          %s322 = sshll.u32 %s315, 4
          %s323 = int_to_ptr.vmem [resolvable:$true] %s322
          %325 = dma.hbm_to_vmem [thread:$0]  %s320, 128, %s323, %s312
        $region40: #{tpu_custom_call.1} parent=35 // pred_fallthru
          _
        // Predicated region
        $region41: #{tpu_custom_call.1} parent=35 // pred_check
          %p326 = pneg %p71
        $region42: #{tpu_custom_call.1} parent=35 // pred_check_branch
          %328 = sbr.rel (%p326) target = $region44
        $region43: #{tpu_custom_call.1} parent=35 // pred_region
          %s329 = sand.u32 %s25, 1
          %s330 = scalar_lea.sflag [#allocation7], %s329
          %s331 = sand.u32 %s61, 1
          %s332 = smul.addr %s331, 8
          %s333 = scalar_lea.vmem [#allocation6], %s332
          %s335 = ssub.s32 128, 128
          %336 = vsyncadd %s330, %s335
          %s337 = smul.addr %s25, 128
          %s338 = scalar_lea.hbm %s1, %s337
          %s340 = sshll.u32 %s333, 4
          %s341 = int_to_ptr.vmem [resolvable:$true] %s340
          %343 = dma.hbm_to_vmem [thread:$0]  %s338, 128, %s341, %s330
        $region44: #{tpu_custom_call.1} parent=35 // pred_fallthru
          _
        // Predicated region
        $region45: #{tpu_custom_call.1} parent=35 // pred_check
          %p344 = pneg %p97
        $region46: #{tpu_custom_call.1} parent=35 // pred_check_branch
          %346 = sbr.rel (%p344) target = $region48
        $region47: #{tpu_custom_call.1} parent=35 // pred_region
          %s347 = sand.u32 %s25, 1
          %s348 = scalar_lea.sflag [#allocation7], %s347
          %s349 = sand.u32 %s87, 1
          %s350 = smul.addr %s349, 8
          %s351 = scalar_lea.vmem [#allocation8], %s350
          %s353 = ssub.s32 128, 128
          %354 = vsyncadd %s348, %s353
          %s355 = smul.addr %s25, 128
          %s356 = scalar_lea.hbm %s2, %s355
          %s358 = sshll.u32 %s351, 4
          %s359 = int_to_ptr.vmem [resolvable:$true] %s358
          %361 = dma.hbm_to_vmem [thread:$0]  %s356, 128, %s359, %s348
        $region48: #{tpu_custom_call.1} parent=35 // pred_fallthru
          _
      $region36: #{tpu_custom_call.1} parent=5 // pred_fallthru
        _
      %p362 = scmp.le.s32.totalorder 1, %s25
      %p363 = scmp.lt.s32.totalorder %s25, 3
      %p364 = pnand %p362, %p363
      %p365 = pneg %p364
      // Predicated region
      $region49: #{tpu_custom_call.1} parent=5 // pred_check
        _
      $region50: #{tpu_custom_call.1} parent=5 // pred_check_branch
        %367 = sbr.rel (%p364) target = $region52
      $region51: #{tpu_custom_call.1} parent=5 // pred_region
        %s368 = ssub.s32 %s25, 1
        %s369 = sand.u32 %s38, 1
        %s370 = scalar_lea.sflag [#allocation4], %s369
        %s371 = sand.u32 %s38, 1
        %s372 = smul.addr %s371, 8
        %s373 = scalar_lea.vmem [#allocation3], %s372
        // Predicated region
        $region53: #{tpu_custom_call.1} parent=51 // pred_check
          %p374 = pneg %p51
        $region54: #{tpu_custom_call.1} parent=51 // pred_check_branch
          %376 = sbr.rel (%p374) target = $region56
        $region55: #{tpu_custom_call.1} parent=51 // pred_region
          %377 = dma.done %s370, 128
        $region56: #{tpu_custom_call.1} parent=51 // pred_fallthru
          _
        %s378 = sand.u32 %s30, 1
        %s379 = scalar_lea.sflag [#allocation7], %s378
        %s380 = sand.u32 %s64, 1
        %s381 = smul.addr %s380, 8
        %s382 = scalar_lea.vmem [#allocation6], %s381
        // Predicated region
        $region57: #{tpu_custom_call.1} parent=51 // pred_check
          %p383 = pneg %p77
        $region58: #{tpu_custom_call.1} parent=51 // pred_check_branch
          %385 = sbr.rel (%p383) target = $region60
        $region59: #{tpu_custom_call.1} parent=51 // pred_region
          %386 = dma.done %s379, 128
        $region60: #{tpu_custom_call.1} parent=51 // pred_fallthru
          _
        %s387 = sand.u32 %s30, 1
        %s388 = scalar_lea.sflag [#allocation7], %s387
        %s389 = sand.u32 %s90, 1
        %s390 = smul.addr %s389, 8
        %s391 = scalar_lea.vmem [#allocation8], %s390
        // Predicated region
        $region61: #{tpu_custom_call.1} parent=51 // pred_check
          %p392 = pneg %p103
        $region62: #{tpu_custom_call.1} parent=51 // pred_check_branch
          %394 = sbr.rel (%p392) target = $region64
        $region63: #{tpu_custom_call.1} parent=51 // pred_region
          %395 = dma.done %s388, 128
        $region64: #{tpu_custom_call.1} parent=51 // pred_fallthru
          _
        // Predicated region
        $region65: #{tpu_custom_call.1} parent=51 // pred_check
          %p396 = pneg %p124
        $region66: #{tpu_custom_call.1} parent=51 // pred_check_branch
          %398 = sbr.rel (%p396) target = $region68
        $region67: #{tpu_custom_call.1} parent=51 // pred_region
          %399 = dma.done [#allocation10], 512
        $region68: #{tpu_custom_call.1} parent=51 // pred_fallthru
          _
        // Predicated region
        $region69: #{tpu_custom_call.1} parent=51 // pred_check
          %p400 = pneg %p145
        $region70: #{tpu_custom_call.1} parent=51 // pred_check_branch
          %402 = sbr.rel (%p400) target = $region72
        $region71: #{tpu_custom_call.1} parent=51 // pred_region
          %403 = dma.done [#allocation10], 512
        $region72: #{tpu_custom_call.1} parent=51 // pred_fallthru
          _
        // Predicated region
        $region73: #{tpu_custom_call.1} parent=51 // pred_check
          %p404 = pneg %p166
        $region74: #{tpu_custom_call.1} parent=51 // pred_check_branch
          %406 = sbr.rel (%p404) target = $region76
        $region75: #{tpu_custom_call.1} parent=51 // pred_region
          %407 = dma.done [#allocation13], 512
        $region76: #{tpu_custom_call.1} parent=51 // pred_fallthru
          _
        // Predicated region
        $region77: #{tpu_custom_call.1} parent=51 // pred_check
          %p408 = pneg %p187
        $region78: #{tpu_custom_call.1} parent=51 // pred_check_branch
          %410 = sbr.rel (%p408) target = $region80
        $region79: #{tpu_custom_call.1} parent=51 // pred_region
          %411 = dma.done [#allocation13], 512
        $region80: #{tpu_custom_call.1} parent=51 // pred_fallthru
          _
        %s412 = sand.u32 %s38, 1
        %s413 = scalar_lea.sflag [#allocation4], %s412
        %s414 = sand.u32 %s38, 1
        %s415 = smul.addr %s414, 8
        %s416 = scalar_lea.vmem [#allocation3], %s415
        %p417 = pneg %p51
        %p418 = pneg %p48
        %s419 = sand.u32 %s30, 1
        %s420 = scalar_lea.sflag [#allocation7], %s419
        %s421 = sand.u32 %s64, 1
        %s422 = smul.addr %s421, 8
        %s423 = scalar_lea.vmem [#allocation6], %s422
        %p424 = pneg %p77
        %p425 = pneg %p74
        %s426 = sand.u32 %s30, 1
        %s427 = scalar_lea.sflag [#allocation7], %s426
        %s428 = sand.u32 %s90, 1
        %s429 = smul.addr %s428, 8
        %s430 = scalar_lea.vmem [#allocation8], %s429
        %p431 = pneg %p103
        %p432 = pneg %p100
        %p433 = pneg %p124
        %p434 = pneg %p121
        %p435 = pneg %p145
        %p436 = pneg %p142
        %p437 = pneg %p166
        %p438 = pneg %p163
        %p439 = pneg %p187
        %p440 = pneg %p184
        %p441 = pneg %p208
        %p442 = pneg %p205
        %p443 = pneg %p234
        %p444 = pneg %p231
        %s445 = sand.u32 %s221, 1
        %s446 = scalar_lea.sflag [#allocation5], %s445
        %s447 = sand.u32 %s221, 1
        %s448 = smul.addr %s447, 8
        %s449 = scalar_lea.vmem [#allocation15], %s448
        %v450 = vld [vmem:[%s373] sm:$0xff]
        %v451 = vld [vmem:[#allocation9] sm:$0xff]
        %v452 = vld [vmem:[#allocation9 + $0x8] sm:$0xff]
        %v453 = vld [vmem:[#allocation9 + $0x10] sm:$0xff]
        %v454 = vld [vmem:[#allocation9 + $0x18] sm:$0xff]
        %vm455 = vcmask 261120
        %v457 = vsel %vm455, %v450, 0
        %459 = vmatprep.subr.mxu0 0.0
        %460 = vmatpush1.msra.mxu0 %v451
        %461 = vmatprep.subr.mxu0 0.0
        %462 = vmatpush1.msra.mxu0 %v452
        %463 = vmatprep.subr.mxu0 0.0
        %464 = vmatpush1.msra.mxu0 %v453
        %465 = vmatprep.subr.mxu0 0.0
        %466 = vmatpush1.msra.mxu0 %v454
        %467 = vmatprep.subr.mxu0 0.0
        %468 = vmatpush1.msra.mxu0 0.0
        %469 = vmatprep.subr.mxu0 0.0
        %470 = vmatpush1.msra.mxu0 0.0
        %471 = vmatprep.subr.mxu0 0.0
        %472 = vmatpush1.msra.mxu0 0.0
        %473 = vmatprep.subr.mxu0 0.0
        %474 = vmatpush1.msra.mxu0 0.0
        %475 = vmatprep.subr.mxu0 0.0
        %476 = vmatpush1.msra.mxu0 0.0
        %477 = vmatprep.subr.mxu0 0.0
        %478 = vmatpush1.msra.mxu0 0.0
        %479 = vmatprep.subr.mxu0 0.0
        %480 = vmatpush1.msra.mxu0 0.0
        %481 = vmatprep.subr.mxu0 0.0
        %482 = vmatpush1.msra.mxu0 0.0
        %483 = vmatprep.subr.mxu0 0.0
        %484 = vmatpush1.msra.mxu0 0.0
        %485 = vmatprep.subr.mxu0 0.0
        %486 = vmatpush1.msra.mxu0 0.0
        %487 = vmatprep.subr.mxu0 0.0
        %488 = vmatpush1.msra.mxu0 0.0
        %489 = vmatprep.subr.mxu0 0.0
        %490 = vmatpush1.msra.mxu0 0.0
        %491 = vmatprep.subr.mxu0 0.0
        %492 = vmatpush1.msra.mxu0 0.0
        %493 = vmatprep.subr.mxu0 0.0
        %494 = vmatpush1.msra.mxu0 0.0
        %495 = vmatprep.subr.mxu0 0.0
        %496 = vmatpush1.msra.mxu0 0.0
        %497 = vmatprep.subr.mxu0 0.0
        %498 = vmatpush1.msra.mxu0 0.0
        %499 = vmatprep.subr.mxu0 0.0
        %500 = vmatpush1.msra.mxu0 0.0
        %501 = vmatprep.subr.mxu0 0.0
        %502 = vmatpush1.msra.mxu0 0.0
        %503 = vmatprep.subr.mxu0 0.0
        %504 = vmatpush1.msra.mxu0 0.0
        %505 = vmatprep.subr.mxu0 0.0
        %506 = vmatpush1.msra.mxu0 0.0
        %507 = vmatprep.subr.mxu0 0.0
        %508 = vmatpush1.msra.mxu0 0.0
        %509 = vmatprep.subr.mxu0 0.0
        %510 = vmatpush1.msra.mxu0 0.0
        %511 = vmatprep.subr.mxu0 0.0
        %512 = vmatpush1.msra.mxu0 0.0
        %513 = vmatprep.subr.mxu0 0.0
        %514 = vmatpush1.msra.mxu0 0.0
        %515 = vmatprep.subr.mxu0 0.0
        %516 = vmatpush1.msra.mxu0 0.0
        %517 = vmatprep.subr.mxu0 0.0
        %518 = vmatpush1.msra.mxu0 0.0
        %519 = vmatprep.subr.mxu0 0.0
        %520 = vmatpush1.msra.mxu0 0.0
        %521 = vmatprep.subr.mxu0 0.0
        %522 = vmatpush1.msra.mxu0 0.0
        %523 = vmatprep.mubr.f32.mxu0 0.0
        %524 = vmatmul.mubr.f32.gmra.mrb[0].mxu0 %v457
        %v525 = vpop.f32.mrb[0].mxu0
        %v526 = vadd.f32 0.0, %v525
        %v527 = vpop.f32.mrb[0].mxu0
        %528 = vdwg.mxu0
        %v529 = vld [vmem:[%s382] sm:$0xff]
        %v530 = vld [vmem:[#allocation11] sm:$0xff]
        %v531 = vld [vmem:[#allocation11 + $0x8] sm:$0xff]
        %v532 = vld [vmem:[#allocation11 + $0x10] sm:$0xff]
        %v533 = vld [vmem:[#allocation11 + $0x18] sm:$0xff]
        %v535 = vsel %vm455, %v529, 0
        %537 = vmatprep.subr.mxu0 0.0
        %538 = vmatpush1.msra.mxu0 %v530
        %539 = vmatprep.subr.mxu0 0.0
        %540 = vmatpush1.msra.mxu0 %v531
        %541 = vmatprep.subr.mxu0 0.0
        %542 = vmatpush1.msra.mxu0 %v532
        %543 = vmatprep.subr.mxu0 0.0
        %544 = vmatpush1.msra.mxu0 %v533
        %545 = vmatprep.subr.mxu0 0.0
        %546 = vmatpush1.msra.mxu0 0.0
        %547 = vmatprep.subr.mxu0 0.0
        %548 = vmatpush1.msra.mxu0 0.0
        %549 = vmatprep.subr.mxu0 0.0
        %550 = vmatpush1.msra.mxu0 0.0
        %551 = vmatprep.subr.mxu0 0.0
        %552 = vmatpush1.msra.mxu0 0.0
        %553 = vmatprep.subr.mxu0 0.0
        %554 = vmatpush1.msra.mxu0 0.0
        %555 = vmatprep.subr.mxu0 0.0
        %556 = vmatpush1.msra.mxu0 0.0
        %557 = vmatprep.subr.mxu0 0.0
        %558 = vmatpush1.msra.mxu0 0.0
        %559 = vmatprep.subr.mxu0 0.0
        %560 = vmatpush1.msra.mxu0 0.0
        %561 = vmatprep.subr.mxu0 0.0
        %562 = vmatpush1.msra.mxu0 0.0
        %563 = vmatprep.subr.mxu0 0.0
        %564 = vmatpush1.msra.mxu0 0.0
        %565 = vmatprep.subr.mxu0 0.0
        %566 = vmatpush1.msra.mxu0 0.0
        %567 = vmatprep.subr.mxu0 0.0
        %568 = vmatpush1.msra.mxu0 0.0
        %569 = vmatprep.subr.mxu0 0.0
        %570 = vmatpush1.msra.mxu0 0.0
        %571 = vmatprep.subr.mxu0 0.0
        %572 = vmatpush1.msra.mxu0 0.0
        %573 = vmatprep.subr.mxu0 0.0
        %574 = vmatpush1.msra.mxu0 0.0
        %575 = vmatprep.subr.mxu0 0.0
        %576 = vmatpush1.msra.mxu0 0.0
        %577 = vmatprep.subr.mxu0 0.0
        %578 = vmatpush1.msra.mxu0 0.0
        %579 = vmatprep.subr.mxu0 0.0
        %580 = vmatpush1.msra.mxu0 0.0
        %581 = vmatprep.subr.mxu0 0.0
        %582 = vmatpush1.msra.mxu0 0.0
        %583 = vmatprep.subr.mxu0 0.0
        %584 = vmatpush1.msra.mxu0 0.0
        %585 = vmatprep.subr.mxu0 0.0
        %586 = vmatpush1.msra.mxu0 0.0
        %587 = vmatprep.subr.mxu0 0.0
        %588 = vmatpush1.msra.mxu0 0.0
        %589 = vmatprep.subr.mxu0 0.0
        %590 = vmatpush1.msra.mxu0 0.0
        %591 = vmatprep.subr.mxu0 0.0
        %592 = vmatpush1.msra.mxu0 0.0
        %593 = vmatprep.subr.mxu0 0.0
        %594 = vmatpush1.msra.mxu0 0.0
        %595 = vmatprep.subr.mxu0 0.0
        %596 = vmatpush1.msra.mxu0 0.0
        %597 = vmatprep.subr.mxu0 0.0
        %598 = vmatpush1.msra.mxu0 0.0
        %599 = vmatprep.subr.mxu0 0.0
        %600 = vmatpush1.msra.mxu0 0.0
        %601 = vmatprep.mubr.f32.mxu0 0.0
        %602 = vmatmul.mubr.f32.gmra.mrb[0].mxu0 %v535
        %v603 = vpop.f32.mrb[0].mxu0
        %v604 = vadd.f32 0.0, %v603
        %v605 = vpop.f32.mrb[0].mxu0
        %606 = vdwg.mxu0
        %v607 = vld [vmem:[%s391] sm:$0xff]
        %v608 = vld [vmem:[#allocation12] sm:$0xff]
        %v609 = vld [vmem:[#allocation12 + $0x8] sm:$0xff]
        %v610 = vld [vmem:[#allocation12 + $0x10] sm:$0xff]
        %v611 = vld [vmem:[#allocation12 + $0x18] sm:$0xff]
        %v613 = vsel %vm455, %v607, 0
        %615 = vmatprep.subr.mxu0 0.0
        %616 = vmatpush1.msra.mxu0 %v608
        %617 = vmatprep.subr.mxu0 0.0
        %618 = vmatpush1.msra.mxu0 %v609
        %619 = vmatprep.subr.mxu0 0.0
        %620 = vmatpush1.msra.mxu0 %v610
        %621 = vmatprep.subr.mxu0 0.0
        %622 = vmatpush1.msra.mxu0 %v611
        %623 = vmatprep.subr.mxu0 0.0
        %624 = vmatpush1.msra.mxu0 0.0
        %625 = vmatprep.subr.mxu0 0.0
        %626 = vmatpush1.msra.mxu0 0.0
        %627 = vmatprep.subr.mxu0 0.0
        %628 = vmatpush1.msra.mxu0 0.0
        %629 = vmatprep.subr.mxu0 0.0
        %630 = vmatpush1.msra.mxu0 0.0
        %631 = vmatprep.subr.mxu0 0.0
        %632 = vmatpush1.msra.mxu0 0.0
        %633 = vmatprep.subr.mxu0 0.0
        %634 = vmatpush1.msra.mxu0 0.0
        %635 = vmatprep.subr.mxu0 0.0
        %636 = vmatpush1.msra.mxu0 0.0
        %637 = vmatprep.subr.mxu0 0.0
        %638 = vmatpush1.msra.mxu0 0.0
        %639 = vmatprep.subr.mxu0 0.0
        %640 = vmatpush1.msra.mxu0 0.0
        %641 = vmatprep.subr.mxu0 0.0
        %642 = vmatpush1.msra.mxu0 0.0
        %643 = vmatprep.subr.mxu0 0.0
        %644 = vmatpush1.msra.mxu0 0.0
        %645 = vmatprep.subr.mxu0 0.0
        %646 = vmatpush1.msra.mxu0 0.0
        %647 = vmatprep.subr.mxu0 0.0
        %648 = vmatpush1.msra.mxu0 0.0
        %649 = vmatprep.subr.mxu0 0.0
        %650 = vmatpush1.msra.mxu0 0.0
        %651 = vmatprep.subr.mxu0 0.0
        %652 = vmatpush1.msra.mxu0 0.0
        %653 = vmatprep.subr.mxu0 0.0
        %654 = vmatpush1.msra.mxu0 0.0
        %655 = vmatprep.subr.mxu0 0.0
        %656 = vmatpush1.msra.mxu0 0.0
        %657 = vmatprep.subr.mxu0 0.0
        %658 = vmatpush1.msra.mxu0 0.0
        %659 = vmatprep.subr.mxu0 0.0
        %660 = vmatpush1.msra.mxu0 0.0
        %661 = vmatprep.subr.mxu0 0.0
        %662 = vmatpush1.msra.mxu0 0.0
        %663 = vmatprep.subr.mxu0 0.0
        %664 = vmatpush1.msra.mxu0 0.0
        %665 = vmatprep.subr.mxu0 0.0
        %666 = vmatpush1.msra.mxu0 0.0
        %667 = vmatprep.subr.mxu0 0.0
        %668 = vmatpush1.msra.mxu0 0.0
        %669 = vmatprep.subr.mxu0 0.0
        %670 = vmatpush1.msra.mxu0 0.0
        %671 = vmatprep.subr.mxu0 0.0
        %672 = vmatpush1.msra.mxu0 0.0
        %673 = vmatprep.subr.mxu0 0.0
        %674 = vmatpush1.msra.mxu0 0.0
        %675 = vmatprep.subr.mxu0 0.0
        %676 = vmatpush1.msra.mxu0 0.0
        %677 = vmatprep.subr.mxu0 0.0
        %678 = vmatpush1.msra.mxu0 0.0
        %679 = vmatprep.mubr.f32.mxu0 0.0
        %680 = vmatmul.mubr.f32.gmra.mrb[0].mxu0 %v613
        %v681 = vpop.f32.mrb[0].mxu0
        %v682 = vadd.f32 0.0, %v681
        %v683 = vpop.f32.mrb[0].mxu0
        %684 = vdwg.mxu0
        %vm685 = vcmask 64512
        %v687 = vsel %vm685, %v526, 0
        %v690 = vsel %vm685, %v604, 0
        %692 = vmatprep.subr.mxu0 0.0
        %693 = vmatpush1.xpose.msra.mxu0 %v690
        %694 = vmatprep.subr.mxu0 0.0
        %695 = vmatpush1.xpose.msra.mxu0 0.0
        %696 = vmatprep.subr.mxu0 0.0
        %697 = vmatpush1.xpose.msra.mxu0 0.0
        %698 = vmatprep.subr.mxu0 0.0
        %699 = vmatpush1.xpose.msra.mxu0 0.0
        %700 = vmatprep.subr.mxu0 0.0
        %701 = vmatpush1.xpose.msra.mxu0 0.0
        %702 = vmatprep.subr.mxu0 0.0
        %703 = vmatpush1.xpose.msra.mxu0 0.0
        %704 = vmatprep.subr.mxu0 0.0
        %705 = vmatpush1.xpose.msra.mxu0 0.0
        %706 = vmatprep.subr.mxu0 0.0
        %707 = vmatpush1.xpose.msra.mxu0 0.0
        %708 = vmatprep.subr.mxu0 0.0
        %709 = vmatpush1.xpose.msra.mxu0 0.0
        %710 = vmatprep.subr.mxu0 0.0
        %711 = vmatpush1.xpose.msra.mxu0 0.0
        %712 = vmatprep.subr.mxu0 0.0
        %713 = vmatpush1.xpose.msra.mxu0 0.0
        %714 = vmatprep.subr.mxu0 0.0
        %715 = vmatpush1.xpose.msra.mxu0 0.0
        %716 = vmatprep.subr.mxu0 0.0
        %717 = vmatpush1.xpose.msra.mxu0 0.0
        %718 = vmatprep.subr.mxu0 0.0
        %719 = vmatpush1.xpose.msra.mxu0 0.0
        %720 = vmatprep.subr.mxu0 0.0
        %721 = vmatpush1.xpose.msra.mxu0 0.0
        %722 = vmatprep.subr.mxu0 0.0
        %723 = vmatpush1.xpose.msra.mxu0 0.0
        %724 = vmatprep.subr.mxu0 0.0
        %725 = vmatpush1.xpose.msra.mxu0 0.0
        %726 = vmatprep.subr.mxu0 0.0
        %727 = vmatpush1.xpose.msra.mxu0 0.0
        %728 = vmatprep.subr.mxu0 0.0
        %729 = vmatpush1.xpose.msra.mxu0 0.0
        %730 = vmatprep.subr.mxu0 0.0
        %731 = vmatpush1.xpose.msra.mxu0 0.0
        %732 = vmatprep.subr.mxu0 0.0
        %733 = vmatpush1.xpose.msra.mxu0 0.0
        %734 = vmatprep.subr.mxu0 0.0
        %735 = vmatpush1.xpose.msra.mxu0 0.0
        %736 = vmatprep.subr.mxu0 0.0
        %737 = vmatpush1.xpose.msra.mxu0 0.0
        %738 = vmatprep.subr.mxu0 0.0
        %739 = vmatpush1.xpose.msra.mxu0 0.0
        %740 = vmatprep.subr.mxu0 0.0
        %741 = vmatpush1.xpose.msra.mxu0 0.0
        %742 = vmatprep.subr.mxu0 0.0
        %743 = vmatpush1.xpose.msra.mxu0 0.0
        %744 = vmatprep.subr.mxu0 0.0
        %745 = vmatpush1.xpose.msra.mxu0 0.0
        %746 = vmatprep.subr.mxu0 0.0
        %747 = vmatpush1.xpose.msra.mxu0 0.0
        %748 = vmatprep.subr.mxu0 0.0
        %749 = vmatpush1.xpose.msra.mxu0 0.0
        %750 = vmatprep.subr.mxu0 0.0
        %751 = vmatpush1.xpose.msra.mxu0 0.0
        %752 = vmatprep.subr.mxu0 0.0
        %753 = vmatpush1.xpose.msra.mxu0 0.0
        %754 = vmatprep.subr.mxu0 0.0
        %755 = vmatpush1.xpose.msra.mxu0 0.0
        %756 = vmatprep.mubr.f32.mxu0 0.0
        %757 = vmatmul.mubr.f32.gmra.mrb[0].mxu0 %v687
        %v758 = vpop.f32.mrb[0].mxu0
        %v759 = vadd.f32 0.0, %v758
        %v760 = vpop.f32.mrb[0].mxu0
        %761 = vdwg.mxu0
        %v762 = vsel %vm685, %v759, -inf
        %763 = vmax.xlane.f32.xlu0 %v762
        %v764 = vpop.xlane.xlu0 %763
        %v765 = vsub.f32 %v759, %v764
        %v766 = vmul.f32 %v765, 1.442695
        %v767 = vpow.pop %v766
        %v768 = vsel %vm685, %v767, 0.0
        %769 = vadd.xlane.f32.xlu0 %v768
        %v770 = vpop.xlane.xlu0 %769
        %v771 = vrcp.pop %v770
        %v772 = vmul.f32 %v767, %v771
        %v774 = vsel %vm685, %v772, 0
        %776 = vmatprep.subr.mxu0 0.0
        %777 = vmatpush1.msra.mxu0 %v682
        %778 = vmatprep.subr.mxu0 0.0
        %779 = vmatpush1.msra.mxu0 0.0
        %780 = vmatprep.subr.mxu0 0.0
        %781 = vmatpush1.msra.mxu0 0.0
        %782 = vmatprep.subr.mxu0 0.0
        %783 = vmatpush1.msra.mxu0 0.0
        %784 = vmatprep.subr.mxu0 0.0
        %785 = vmatpush1.msra.mxu0 0.0
        %786 = vmatprep.subr.mxu0 0.0
        %787 = vmatpush1.msra.mxu0 0.0
        %788 = vmatprep.subr.mxu0 0.0
        %789 = vmatpush1.msra.mxu0 0.0
        %790 = vmatprep.subr.mxu0 0.0
        %791 = vmatpush1.msra.mxu0 0.0
        %792 = vmatprep.subr.mxu0 0.0
        %793 = vmatpush1.msra.mxu0 0.0
        %794 = vmatprep.subr.mxu0 0.0
        %795 = vmatpush1.msra.mxu0 0.0
        %796 = vmatprep.subr.mxu0 0.0
        %797 = vmatpush1.msra.mxu0 0.0
        %798 = vmatprep.subr.mxu0 0.0
        %799 = vmatpush1.msra.mxu0 0.0
        %800 = vmatprep.subr.mxu0 0.0
        %801 = vmatpush1.msra.mxu0 0.0
        %802 = vmatprep.subr.mxu0 0.0
        %803 = vmatpush1.msra.mxu0 0.0
        %804 = vmatprep.subr.mxu0 0.0
        %805 = vmatpush1.msra.mxu0 0.0
        %806 = vmatprep.subr.mxu0 0.0
        %807 = vmatpush1.msra.mxu0 0.0
        %808 = vmatprep.subr.mxu0 0.0
        %809 = vmatpush1.msra.mxu0 0.0
        %810 = vmatprep.subr.mxu0 0.0
        %811 = vmatpush1.msra.mxu0 0.0
        %812 = vmatprep.subr.mxu0 0.0
        %813 = vmatpush1.msra.mxu0 0.0
        %814 = vmatprep.subr.mxu0 0.0
        %815 = vmatpush1.msra.mxu0 0.0
        %816 = vmatprep.subr.mxu0 0.0
        %817 = vmatpush1.msra.mxu0 0.0
        %818 = vmatprep.subr.mxu0 0.0
        %819 = vmatpush1.msra.mxu0 0.0
        %820 = vmatprep.subr.mxu0 0.0
        %821 = vmatpush1.msra.mxu0 0.0
        %822 = vmatprep.subr.mxu0 0.0
        %823 = vmatpush1.msra.mxu0 0.0
        %824 = vmatprep.subr.mxu0 0.0
        %825 = vmatpush1.msra.mxu0 0.0
        %826 = vmatprep.subr.mxu0 0.0
        %827 = vmatpush1.msra.mxu0 0.0
        %828 = vmatprep.subr.mxu0 0.0
        %829 = vmatpush1.msra.mxu0 0.0
        %830 = vmatprep.subr.mxu0 0.0
        %831 = vmatpush1.msra.mxu0 0.0
        %832 = vmatprep.subr.mxu0 0.0
        %833 = vmatpush1.msra.mxu0 0.0
        %834 = vmatprep.subr.mxu0 0.0
        %835 = vmatpush1.msra.mxu0 0.0
        %836 = vmatprep.subr.mxu0 0.0
        %837 = vmatpush1.msra.mxu0 0.0
        %838 = vmatprep.subr.mxu0 0.0
        %839 = vmatpush1.msra.mxu0 0.0
        %840 = vmatprep.mubr.f32.mxu0 0.0
        %841 = vmatmul.mubr.f32.gmra.mrb[0].mxu0 %v774
        %v842 = vpop.f32.mrb[0].mxu0
        %v843 = vadd.f32 0.0, %v842
        %v844 = vpop.f32.mrb[0].mxu0
        %845 = vdwg.mxu0
        %846 = vst.msk [vmem:[#allocation2] sm:$0xff] %vm685, %v843
        %847 = vrot.lane.b32.xlu0 %v526, 120
        %v848 = vpop.permute.xlu0 %847
        %849 = vrot.lane.b32.xlu0 %v604, 120
        %v850 = vpop.permute.xlu0 %849
        %v851 = vsel %vm685, %v848, 0
        %v853 = vsel %vm685, %v850, 0
        %855 = vmatprep.subr.mxu0 0.0
        %856 = vmatpush1.xpose.msra.mxu0 %v853
        %857 = vmatprep.subr.mxu0 0.0
        %858 = vmatpush1.xpose.msra.mxu0 0.0
        %859 = vmatprep.subr.mxu0 0.0
        %860 = vmatpush1.xpose.msra.mxu0 0.0
        %861 = vmatprep.subr.mxu0 0.0
        %862 = vmatpush1.xpose.msra.mxu0 0.0
        %863 = vmatprep.subr.mxu0 0.0
        %864 = vmatpush1.xpose.msra.mxu0 0.0
        %865 = vmatprep.subr.mxu0 0.0
        %866 = vmatpush1.xpose.msra.mxu0 0.0
        %867 = vmatprep.subr.mxu0 0.0
        %868 = vmatpush1.xpose.msra.mxu0 0.0
        %869 = vmatprep.subr.mxu0 0.0
        %870 = vmatpush1.xpose.msra.mxu0 0.0
        %871 = vmatprep.subr.mxu0 0.0
        %872 = vmatpush1.xpose.msra.mxu0 0.0
        %873 = vmatprep.subr.mxu0 0.0
        %874 = vmatpush1.xpose.msra.mxu0 0.0
        %875 = vmatprep.subr.mxu0 0.0
        %876 = vmatpush1.xpose.msra.mxu0 0.0
        %877 = vmatprep.subr.mxu0 0.0
        %878 = vmatpush1.xpose.msra.mxu0 0.0
        %879 = vmatprep.subr.mxu0 0.0
        %880 = vmatpush1.xpose.msra.mxu0 0.0
        %881 = vmatprep.subr.mxu0 0.0
        %882 = vmatpush1.xpose.msra.mxu0 0.0
        %883 = vmatprep.subr.mxu0 0.0
        %884 = vmatpush1.xpose.msra.mxu0 0.0
        %885 = vmatprep.subr.mxu0 0.0
        %886 = vmatpush1.xpose.msra.mxu0 0.0
        %887 = vmatprep.subr.mxu0 0.0
        %888 = vmatpush1.xpose.msra.mxu0 0.0
        %889 = vmatprep.subr.mxu0 0.0
        %890 = vmatpush1.xpose.msra.mxu0 0.0
        %891 = vmatprep.subr.mxu0 0.0
        %892 = vmatpush1.xpose.msra.mxu0 0.0
        %893 = vmatprep.subr.mxu0 0.0
        %894 = vmatpush1.xpose.msra.mxu0 0.0
        %895 = vmatprep.subr.mxu0 0.0
        %896 = vmatpush1.xpose.msra.mxu0 0.0
        %897 = vmatprep.subr.mxu0 0.0
        %898 = vmatpush1.xpose.msra.mxu0 0.0
        %899 = vmatprep.subr.mxu0 0.0
        %900 = vmatpush1.xpose.msra.mxu0 0.0
        %901 = vmatprep.subr.mxu0 0.0
        %902 = vmatpush1.xpose.msra.mxu0 0.0
        %903 = vmatprep.subr.mxu0 0.0
        %904 = vmatpush1.xpose.msra.mxu0 0.0
        %905 = vmatprep.subr.mxu0 0.0
        %906 = vmatpush1.xpose.msra.mxu0 0.0
        %907 = vmatprep.subr.mxu0 0.0
        %908 = vmatpush1.xpose.msra.mxu0 0.0
        %909 = vmatprep.subr.mxu0 0.0
        %910 = vmatpush1.xpose.msra.mxu0 0.0
        %911 = vmatprep.subr.mxu0 0.0
        %912 = vmatpush1.xpose.msra.mxu0 0.0
        %913 = vmatprep.subr.mxu0 0.0
        %914 = vmatpush1.xpose.msra.mxu0 0.0
        %915 = vmatprep.subr.mxu0 0.0
        %916 = vmatpush1.xpose.msra.mxu0 0.0
        %917 = vmatprep.subr.mxu0 0.0
        %918 = vmatpush1.xpose.msra.mxu0 0.0
        %919 = vmatprep.mubr.f32.mxu0 0.0
        %920 = vmatmul.mubr.f32.gmra.mrb[0].mxu0 %v851
        %v921 = vpop.f32.mrb[0].mxu0
        %v922 = vadd.f32 0.0, %v921
        %v923 = vpop.f32.mrb[0].mxu0
        %924 = vdwg.mxu0
        %v925 = vsel %vm685, %v922, -inf
        %926 = vmax.xlane.f32.xlu0 %v925
        %v927 = vpop.xlane.xlu0 %926
        %v928 = vsub.f32 %v922, %v927
        %v929 = vmul.f32 %v928, 1.442695
        %v930 = vpow.pop %v929
        %v931 = vsel %vm685, %v930, 0.0
        %932 = vadd.xlane.f32.xlu0 %v931
        %v933 = vpop.xlane.xlu0 %932
        %v934 = vrcp.pop %v933
        %v935 = vmul.f32 %v930, %v934
        %937 = vrot.lane.b32.xlu0 %v682, 120
        %v938 = vpop.permute.xlu0 %937
        %v941 = vsel %vm685, %v935, 0
        %943 = vmatprep.subr.mxu0 0.0
        %944 = vmatpush1.msra.mxu0 %v938
        %945 = vmatprep.subr.mxu0 0.0
        %946 = vmatpush1.msra.mxu0 0.0
        %947 = vmatprep.subr.mxu0 0.0
        %948 = vmatpush1.msra.mxu0 0.0
        %949 = vmatprep.subr.mxu0 0.0
        %950 = vmatpush1.msra.mxu0 0.0
        %951 = vmatprep.subr.mxu0 0.0
        %952 = vmatpush1.msra.mxu0 0.0
        %953 = vmatprep.subr.mxu0 0.0
        %954 = vmatpush1.msra.mxu0 0.0
        %955 = vmatprep.subr.mxu0 0.0
        %956 = vmatpush1.msra.mxu0 0.0
        %957 = vmatprep.subr.mxu0 0.0
        %958 = vmatpush1.msra.mxu0 0.0
        %959 = vmatprep.subr.mxu0 0.0
        %960 = vmatpush1.msra.mxu0 0.0
        %961 = vmatprep.subr.mxu0 0.0
        %962 = vmatpush1.msra.mxu0 0.0
        %963 = vmatprep.subr.mxu0 0.0
        %964 = vmatpush1.msra.mxu0 0.0
        %965 = vmatprep.subr.mxu0 0.0
        %966 = vmatpush1.msra.mxu0 0.0
        %967 = vmatprep.subr.mxu0 0.0
        %968 = vmatpush1.msra.mxu0 0.0
        %969 = vmatprep.subr.mxu0 0.0
        %970 = vmatpush1.msra.mxu0 0.0
        %971 = vmatprep.subr.mxu0 0.0
        %972 = vmatpush1.msra.mxu0 0.0
        %973 = vmatprep.subr.mxu0 0.0
        %974 = vmatpush1.msra.mxu0 0.0
        %975 = vmatprep.subr.mxu0 0.0
        %976 = vmatpush1.msra.mxu0 0.0
        %977 = vmatprep.subr.mxu0 0.0
        %978 = vmatpush1.msra.mxu0 0.0
        %979 = vmatprep.subr.mxu0 0.0
        %980 = vmatpush1.msra.mxu0 0.0
        %981 = vmatprep.subr.mxu0 0.0
        %982 = vmatpush1.msra.mxu0 0.0
        %983 = vmatprep.subr.mxu0 0.0
        %984 = vmatpush1.msra.mxu0 0.0
        %985 = vmatprep.subr.mxu0 0.0
        %986 = vmatpush1.msra.mxu0 0.0
        %987 = vmatprep.subr.mxu0 0.0
        %988 = vmatpush1.msra.mxu0 0.0
        %989 = vmatprep.subr.mxu0 0.0
        %990 = vmatpush1.msra.mxu0 0.0
        %991 = vmatprep.subr.mxu0 0.0
        %992 = vmatpush1.msra.mxu0 0.0
        %993 = vmatprep.subr.mxu0 0.0
        %994 = vmatpush1.msra.mxu0 0.0
        %995 = vmatprep.subr.mxu0 0.0
        %996 = vmatpush1.msra.mxu0 0.0
        %997 = vmatprep.subr.mxu0 0.0
        %998 = vmatpush1.msra.mxu0 0.0
        %999 = vmatprep.subr.mxu0 0.0
        %1000 = vmatpush1.msra.mxu0 0.0
        %1001 = vmatprep.subr.mxu0 0.0
        %1002 = vmatpush1.msra.mxu0 0.0
        %1003 = vmatprep.subr.mxu0 0.0
        %1004 = vmatpush1.msra.mxu0 0.0
        %1005 = vmatprep.subr.mxu0 0.0
        %1006 = vmatpush1.msra.mxu0 0.0
        %1007 = vmatprep.mubr.f32.mxu0 0.0
        %1008 = vmatmul.mubr.f32.gmra.mrb[0].mxu0 %v941
        %v1009 = vpop.f32.mrb[0].mxu0
        %v1010 = vadd.f32 0.0, %v1009
        %v1011 = vpop.f32.mrb[0].mxu0
        %1012 = vdwg.mxu0
        %1014 = vrot.lane.b32.xlu0 %v1010, 8
        %v1015 = vpop.permute.xlu0 %1014
        %vm1017 = vcmask 130112
        %1018 = vst.msk [vmem:[#allocation2] sm:$0xff] %vm1017, %v1015
        %1019 = vrot.lane.b32.xlu0 %v526, 112
        %v1020 = vpop.permute.xlu0 %1019
        %1021 = vrot.lane.b32.xlu0 %v604, 112
        %v1022 = vpop.permute.xlu0 %1021
        %v1023 = vsel %vm685, %v1020, 0
        %v1025 = vsel %vm685, %v1022, 0
        %1027 = vmatprep.subr.mxu0 0.0
        %1028 = vmatpush1.xpose.msra.mxu0 %v1025
        %1029 = vmatprep.subr.mxu0 0.0
        %1030 = vmatpush1.xpose.msra.mxu0 0.0
        %1031 = vmatprep.subr.mxu0 0.0
        %1032 = vmatpush1.xpose.msra.mxu0 0.0
        %1033 = vmatprep.subr.mxu0 0.0
        %1034 = vmatpush1.xpose.msra.mxu0 0.0
        %1035 = vmatprep.subr.mxu0 0.0
        %1036 = vmatpush1.xpose.msra.mxu0 0.0
        %1037 = vmatprep.subr.mxu0 0.0
        %1038 = vmatpush1.xpose.msra.mxu0 0.0
        %1039 = vmatprep.subr.mxu0 0.0
        %1040 = vmatpush1.xpose.msra.mxu0 0.0
        %1041 = vmatprep.subr.mxu0 0.0
        %1042 = vmatpush1.xpose.msra.mxu0 0.0
        %1043 = vmatprep.subr.mxu0 0.0
        %1044 = vmatpush1.xpose.msra.mxu0 0.0
        %1045 = vmatprep.subr.mxu0 0.0
        %1046 = vmatpush1.xpose.msra.mxu0 0.0
        %1047 = vmatprep.subr.mxu0 0.0
        %1048 = vmatpush1.xpose.msra.mxu0 0.0
        %1049 = vmatprep.subr.mxu0 0.0
        %1050 = vmatpush1.xpose.msra.mxu0 0.0
        %1051 = vmatprep.subr.mxu0 0.0
        %1052 = vmatpush1.xpose.msra.mxu0 0.0
        %1053 = vmatprep.subr.mxu0 0.0
        %1054 = vmatpush1.xpose.msra.mxu0 0.0
        %1055 = vmatprep.subr.mxu0 0.0
        %1056 = vmatpush1.xpose.msra.mxu0 0.0
        %1057 = vmatprep.subr.mxu0 0.0
        %1058 = vmatpush1.xpose.msra.mxu0 0.0
        %1059 = vmatprep.subr.mxu0 0.0
        %1060 = vmatpush1.xpose.msra.mxu0 0.0
        %1061 = vmatprep.subr.mxu0 0.0
        %1062 = vmatpush1.xpose.msra.mxu0 0.0
        %1063 = vmatprep.subr.mxu0 0.0
        %1064 = vmatpush1.xpose.msra.mxu0 0.0
        %1065 = vmatprep.subr.mxu0 0.0
        %1066 = vmatpush1.xpose.msra.mxu0 0.0
        %1067 = vmatprep.subr.mxu0 0.0
        %1068 = vmatpush1.xpose.msra.mxu0 0.0
        %1069 = vmatprep.subr.mxu0 0.0
        %1070 = vmatpush1.xpose.msra.mxu0 0.0
        %1071 = vmatprep.subr.mxu0 0.0
        %1072 = vmatpush1.xpose.msra.mxu0 0.0
        %1073 = vmatprep.subr.mxu0 0.0
        %1074 = vmatpush1.xpose.msra.mxu0 0.0
        %1075 = vmatprep.subr.mxu0 0.0
        %1076 = vmatpush1.xpose.msra.mxu0 0.0
        %1077 = vmatprep.subr.mxu0 0.0
        %1078 = vmatpush1.xpose.msra.mxu0 0.0
        %1079 = vmatprep.subr.mxu0 0.0
        %1080 = vmatpush1.xpose.msra.mxu0 0.0
        %1081 = vmatprep.subr.mxu0 0.0
        %1082 = vmatpush1.xpose.msra.mxu0 0.0
        %1083 = vmatprep.subr.mxu0 0.0
        %1084 = vmatpush1.xpose.msra.mxu0 0.0
        %1085 = vmatprep.subr.mxu0 0.0
        %1086 = vmatpush1.xpose.msra.mxu0 0.0
        %1087 = vmatprep.subr.mxu0 0.0
        %1088 = vmatpush1.xpose.msra.mxu0 0.0
        %1089 = vmatprep.subr.mxu0 0.0
        %1090 = vmatpush1.xpose.msra.mxu0 0.0
        %1091 = vmatprep.mubr.f32.mxu0 0.0
        %1092 = vmatmul.mubr.f32.gmra.mrb[0].mxu0 %v1023
        %v1093 = vpop.f32.mrb[0].mxu0
        %v1094 = vadd.f32 0.0, %v1093
        %v1095 = vpop.f32.mrb[0].mxu0
        %1096 = vdwg.mxu0
        %v1097 = vsel %vm685, %v1094, -inf
        %1098 = vmax.xlane.f32.xlu0 %v1097
        %v1099 = vpop.xlane.xlu0 %1098
        %v1100 = vsub.f32 %v1094, %v1099
        %v1101 = vmul.f32 %v1100, 1.442695
        %v1102 = vpow.pop %v1101
        %v1103 = vsel %vm685, %v1102, 0.0
        %1104 = vadd.xlane.f32.xlu0 %v1103
        %v1105 = vpop.xlane.xlu0 %1104
        %v1106 = vrcp.pop %v1105
        %v1107 = vmul.f32 %v1102, %v1106
        %1108 = vrot.lane.b32.xlu0 %v682, 112
        %v1109 = vpop.permute.xlu0 %1108
        %v1112 = vsel %vm685, %v1107, 0
        %1114 = vmatprep.subr.mxu0 0.0
        %1115 = vmatpush1.msra.mxu0 %v1109
        %1116 = vmatprep.subr.mxu0 0.0
        %1117 = vmatpush1.msra.mxu0 0.0
        %1118 = vmatprep.subr.mxu0 0.0
        %1119 = vmatpush1.msra.mxu0 0.0
        %1120 = vmatprep.subr.mxu0 0.0
        %1121 = vmatpush1.msra.mxu0 0.0
        %1122 = vmatprep.subr.mxu0 0.0
        %1123 = vmatpush1.msra.mxu0 0.0
        %1124 = vmatprep.subr.mxu0 0.0
        %1125 = vmatpush1.msra.mxu0 0.0
        %1126 = vmatprep.subr.mxu0 0.0
        %1127 = vmatpush1.msra.mxu0 0.0
        %1128 = vmatprep.subr.mxu0 0.0
        %1129 = vmatpush1.msra.mxu0 0.0
        %1130 = vmatprep.subr.mxu0 0.0
        %1131 = vmatpush1.msra.mxu0 0.0
        %1132 = vmatprep.subr.mxu0 0.0
        %1133 = vmatpush1.msra.mxu0 0.0
        %1134 = vmatprep.subr.mxu0 0.0
        %1135 = vmatpush1.msra.mxu0 0.0
        %1136 = vmatprep.subr.mxu0 0.0
        %1137 = vmatpush1.msra.mxu0 0.0
        %1138 = vmatprep.subr.mxu0 0.0
        %1139 = vmatpush1.msra.mxu0 0.0
        %1140 = vmatprep.subr.mxu0 0.0
        %1141 = vmatpush1.msra.mxu0 0.0
        %1142 = vmatprep.subr.mxu0 0.0
        %1143 = vmatpush1.msra.mxu0 0.0
        %1144 = vmatprep.subr.mxu0 0.0
        %1145 = vmatpush1.msra.mxu0 0.0
        %1146 = vmatprep.subr.mxu0 0.0
        %1147 = vmatpush1.msra.mxu0 0.0
        %1148 = vmatprep.subr.mxu0 0.0
        %1149 = vmatpush1.msra.mxu0 0.0
        %1150 = vmatprep.subr.mxu0 0.0
        %1151 = vmatpush1.msra.mxu0 0.0
        %1152 = vmatprep.subr.mxu0 0.0
        %1153 = vmatpush1.msra.mxu0 0.0
        %1154 = vmatprep.subr.mxu0 0.0
        %1155 = vmatpush1.msra.mxu0 0.0
        %1156 = vmatprep.subr.mxu0 0.0
        %1157 = vmatpush1.msra.mxu0 0.0
        %1158 = vmatprep.subr.mxu0 0.0
        %1159 = vmatpush1.msra.mxu0 0.0
        %1160 = vmatprep.subr.mxu0 0.0
        %1161 = vmatpush1.msra.mxu0 0.0
        %1162 = vmatprep.subr.mxu0 0.0
        %1163 = vmatpush1.msra.mxu0 0.0
        %1164 = vmatprep.subr.mxu0 0.0
        %1165 = vmatpush1.msra.mxu0 0.0
        %1166 = vmatprep.subr.mxu0 0.0
        %1167 = vmatpush1.msra.mxu0 0.0
        %1168 = vmatprep.subr.mxu0 0.0
        %1169 = vmatpush1.msra.mxu0 0.0
        %1170 = vmatprep.subr.mxu0 0.0
        %1171 = vmatpush1.msra.mxu0 0.0
        %1172 = vmatprep.subr.mxu0 0.0
        %1173 = vmatpush1.msra.mxu0 0.0
        %1174 = vmatprep.subr.mxu0 0.0
        %1175 = vmatpush1.msra.mxu0 0.0
        %1176 = vmatprep.subr.mxu0 0.0
        %1177 = vmatpush1.msra.mxu0 0.0
        %1178 = vmatprep.mubr.f32.mxu0 0.0
        %1179 = vmatmul.mubr.f32.gmra.mrb[0].mxu0 %v1112
        %v1180 = vpop.f32.mrb[0].mxu0
        %v1181 = vadd.f32 0.0, %v1180
        %v1182 = vpop.f32.mrb[0].mxu0
        %1183 = vdwg.mxu0
        %1185 = vrot.lane.b32.xlu0 %v1181, 16
        %v1186 = vpop.permute.xlu0 %1185
        %vm1188 = vcmask 195712
        %1189 = vst.msk [vmem:[#allocation2] sm:$0xff] %vm1188, %v1186
        %1190 = vrot.lane.b32.xlu0 %v526, 104
        %v1191 = vpop.permute.xlu0 %1190
        %1192 = vrot.lane.b32.xlu0 %v604, 104
        %v1193 = vpop.permute.xlu0 %1192
        %v1194 = vsel %vm685, %v1191, 0
        %v1196 = vsel %vm685, %v1193, 0
        %1198 = vmatprep.subr.mxu0 0.0
        %1199 = vmatpush1.xpose.msra.mxu0 %v1196
        %1200 = vmatprep.subr.mxu0 0.0
        %1201 = vmatpush1.xpose.msra.mxu0 0.0
        %1202 = vmatprep.subr.mxu0 0.0
        %1203 = vmatpush1.xpose.msra.mxu0 0.0
        %1204 = vmatprep.subr.mxu0 0.0
        %1205 = vmatpush1.xpose.msra.mxu0 0.0
        %1206 = vmatprep.subr.mxu0 0.0
        %1207 = vmatpush1.xpose.msra.mxu0 0.0
        %1208 = vmatprep.subr.mxu0 0.0
        %1209 = vmatpush1.xpose.msra.mxu0 0.0
        %1210 = vmatprep.subr.mxu0 0.0
        %1211 = vmatpush1.xpose.msra.mxu0 0.0
        %1212 = vmatprep.subr.mxu0 0.0
        %1213 = vmatpush1.xpose.msra.mxu0 0.0
        %1214 = vmatprep.subr.mxu0 0.0
        %1215 = vmatpush1.xpose.msra.mxu0 0.0
        %1216 = vmatprep.subr.mxu0 0.0
        %1217 = vmatpush1.xpose.msra.mxu0 0.0
        %1218 = vmatprep.subr.mxu0 0.0
        %1219 = vmatpush1.xpose.msra.mxu0 0.0
        %1220 = vmatprep.subr.mxu0 0.0
        %1221 = vmatpush1.xpose.msra.mxu0 0.0
        %1222 = vmatprep.subr.mxu0 0.0
        %1223 = vmatpush1.xpose.msra.mxu0 0.0
        %1224 = vmatprep.subr.mxu0 0.0
        %1225 = vmatpush1.xpose.msra.mxu0 0.0
        %1226 = vmatprep.subr.mxu0 0.0
        %1227 = vmatpush1.xpose.msra.mxu0 0.0
        %1228 = vmatprep.subr.mxu0 0.0
        %1229 = vmatpush1.xpose.msra.mxu0 0.0
        %1230 = vmatprep.subr.mxu0 0.0
        %1231 = vmatpush1.xpose.msra.mxu0 0.0
        %1232 = vmatprep.subr.mxu0 0.0
        %1233 = vmatpush1.xpose.msra.mxu0 0.0
        %1234 = vmatprep.subr.mxu0 0.0
        %1235 = vmatpush1.xpose.msra.mxu0 0.0
        %1236 = vmatprep.subr.mxu0 0.0
        %1237 = vmatpush1.xpose.msra.mxu0 0.0
        %1238 = vmatprep.subr.mxu0 0.0
        %1239 = vmatpush1.xpose.msra.mxu0 0.0
        %1240 = vmatprep.subr.mxu0 0.0
        %1241 = vmatpush1.xpose.msra.mxu0 0.0
        %1242 = vmatprep.subr.mxu0 0.0
        %1243 = vmatpush1.xpose.msra.mxu0 0.0
        %1244 = vmatprep.subr.mxu0 0.0
        %1245 = vmatpush1.xpose.msra.mxu0 0.0
        %1246 = vmatprep.subr.mxu0 0.0
        %1247 = vmatpush1.xpose.msra.mxu0 0.0
        %1248 = vmatprep.subr.mxu0 0.0
        %1249 = vmatpush1.xpose.msra.mxu0 0.0
        %1250 = vmatprep.subr.mxu0 0.0
        %1251 = vmatpush1.xpose.msra.mxu0 0.0
        %1252 = vmatprep.subr.mxu0 0.0
        %1253 = vmatpush1.xpose.msra.mxu0 0.0
        %1254 = vmatprep.subr.mxu0 0.0
        %1255 = vmatpush1.xpose.msra.mxu0 0.0
        %1256 = vmatprep.subr.mxu0 0.0
        %1257 = vmatpush1.xpose.msra.mxu0 0.0
        %1258 = vmatprep.subr.mxu0 0.0
        %1259 = vmatpush1.xpose.msra.mxu0 0.0
        %1260 = vmatprep.subr.mxu0 0.0
        %1261 = vmatpush1.xpose.msra.mxu0 0.0
        %1262 = vmatprep.mubr.f32.mxu0 0.0
        %1263 = vmatmul.mubr.f32.gmra.mrb[0].mxu0 %v1194
        %v1264 = vpop.f32.mrb[0].mxu0
        %v1265 = vadd.f32 0.0, %v1264
        %v1266 = vpop.f32.mrb[0].mxu0
        %1267 = vdwg.mxu0
        %v1268 = vsel %vm685, %v1265, -inf
        %1269 = vmax.xlane.f32.xlu0 %v1268
        %v1270 = vpop.xlane.xlu0 %1269
        %v1271 = vsub.f32 %v1265, %v1270
        %v1272 = vmul.f32 %v1271, 1.442695
        %v1273 = vpow.pop %v1272
        %v1274 = vsel %vm685, %v1273, 0.0
        %1275 = vadd.xlane.f32.xlu0 %v1274
        %v1276 = vpop.xlane.xlu0 %1275
        %v1277 = vrcp.pop %v1276
        %v1278 = vmul.f32 %v1273, %v1277
        %1279 = vrot.lane.b32.xlu0 %v682, 104
        %v1280 = vpop.permute.xlu0 %1279
        %v1283 = vsel %vm685, %v1278, 0
        %1285 = vmatprep.subr.mxu0 0.0
        %1286 = vmatpush1.msra.mxu0 %v1280
        %1287 = vmatprep.subr.mxu0 0.0
        %1288 = vmatpush1.msra.mxu0 0.0
        %1289 = vmatprep.subr.mxu0 0.0
        %1290 = vmatpush1.msra.mxu0 0.0
        %1291 = vmatprep.subr.mxu0 0.0
        %1292 = vmatpush1.msra.mxu0 0.0
        %1293 = vmatprep.subr.mxu0 0.0
        %1294 = vmatpush1.msra.mxu0 0.0
        %1295 = vmatprep.subr.mxu0 0.0
        %1296 = vmatpush1.msra.mxu0 0.0
        %1297 = vmatprep.subr.mxu0 0.0
        %1298 = vmatpush1.msra.mxu0 0.0
        %1299 = vmatprep.subr.mxu0 0.0
        %1300 = vmatpush1.msra.mxu0 0.0
        %1301 = vmatprep.subr.mxu0 0.0
        %1302 = vmatpush1.msra.mxu0 0.0
        %1303 = vmatprep.subr.mxu0 0.0
        %1304 = vmatpush1.msra.mxu0 0.0
        %1305 = vmatprep.subr.mxu0 0.0
        %1306 = vmatpush1.msra.mxu0 0.0
        %1307 = vmatprep.subr.mxu0 0.0
        %1308 = vmatpush1.msra.mxu0 0.0
        %1309 = vmatprep.subr.mxu0 0.0
        %1310 = vmatpush1.msra.mxu0 0.0
        %1311 = vmatprep.subr.mxu0 0.0
        %1312 = vmatpush1.msra.mxu0 0.0
        %1313 = vmatprep.subr.mxu0 0.0
        %1314 = vmatpush1.msra.mxu0 0.0
        %1315 = vmatprep.subr.mxu0 0.0
        %1316 = vmatpush1.msra.mxu0 0.0
        %1317 = vmatprep.subr.mxu0 0.0
        %1318 = vmatpush1.msra.mxu0 0.0
        %1319 = vmatprep.subr.mxu0 0.0
        %1320 = vmatpush1.msra.mxu0 0.0
        %1321 = vmatprep.subr.mxu0 0.0
        %1322 = vmatpush1.msra.mxu0 0.0
        %1323 = vmatprep.subr.mxu0 0.0
        %1324 = vmatpush1.msra.mxu0 0.0
        %1325 = vmatprep.subr.mxu0 0.0
        %1326 = vmatpush1.msra.mxu0 0.0
        %1327 = vmatprep.subr.mxu0 0.0
        %1328 = vmatpush1.msra.mxu0 0.0
        %1329 = vmatprep.subr.mxu0 0.0
        %1330 = vmatpush1.msra.mxu0 0.0
        %1331 = vmatprep.subr.mxu0 0.0
        %1332 = vmatpush1.msra.mxu0 0.0
        %1333 = vmatprep.subr.mxu0 0.0
        %1334 = vmatpush1.msra.mxu0 0.0
        %1335 = vmatprep.subr.mxu0 0.0
        %1336 = vmatpush1.msra.mxu0 0.0
        %1337 = vmatprep.subr.mxu0 0.0
        %1338 = vmatpush1.msra.mxu0 0.0
        %1339 = vmatprep.subr.mxu0 0.0
        %1340 = vmatpush1.msra.mxu0 0.0
        %1341 = vmatprep.subr.mxu0 0.0
        %1342 = vmatpush1.msra.mxu0 0.0
        %1343 = vmatprep.subr.mxu0 0.0
        %1344 = vmatpush1.msra.mxu0 0.0
        %1345 = vmatprep.subr.mxu0 0.0
        %1346 = vmatpush1.msra.mxu0 0.0
        %1347 = vmatprep.subr.mxu0 0.0
        %1348 = vmatpush1.msra.mxu0 0.0
        %1349 = vmatprep.mubr.f32.mxu0 0.0
        %1350 = vmatmul.mubr.f32.gmra.mrb[0].mxu0 %v1283
        %v1351 = vpop.f32.mrb[0].mxu0
        %v1352 = vadd.f32 0.0, %v1351
        %v1353 = vpop.f32.mrb[0].mxu0
        %1354 = vdwg.mxu0
        %1356 = vrot.lane.b32.xlu0 %v1352, 24
        %v1357 = vpop.permute.xlu0 %1356
        %vm1359 = vcmask 261312
        %1360 = vst.msk [vmem:[#allocation2] sm:$0xff] %vm1359, %v1357
        %v1361 = vld [vmem:[#allocation2] sm:$0xff]
        %v1362 = vld [vmem:[#allocation14] sm:$0xff]
        %v1363 = vld [vmem:[#allocation14 + $0x8] sm:$0xff]
        %v1364 = vld [vmem:[#allocation14 + $0x10] sm:$0xff]
        %v1365 = vld [vmem:[#allocation14 + $0x18] sm:$0xff]
        %v1366 = vld [vmem:[%s7] sm:$0x1]
        %v1368 = vlaneseq
        %v1369 = vshrl.u32 %v1368, 7
        %v1370 = vsub.s32 0, %v1369
        %v1371 = vrot.slane %v1366, %v1370
        %v1374 = vsel %vm455, %v1361, 0
        %1376 = vmatprep.subr.mxu0 0.0
        %1377 = vmatpush1.msra.mxu0 %v1362
        %1378 = vmatprep.subr.mxu0 0.0
        %1379 = vmatpush1.msra.mxu0 %v1363
        %1380 = vmatprep.subr.mxu0 0.0
        %1381 = vmatpush1.msra.mxu0 %v1364
        %1382 = vmatprep.subr.mxu0 0.0
        %1383 = vmatpush1.msra.mxu0 %v1365
        %1384 = vmatprep.subr.mxu0 0.0
        %1385 = vmatpush1.msra.mxu0 0.0
        %1386 = vmatprep.subr.mxu0 0.0
        %1387 = vmatpush1.msra.mxu0 0.0
        %1388 = vmatprep.subr.mxu0 0.0
        %1389 = vmatpush1.msra.mxu0 0.0
        %1390 = vmatprep.subr.mxu0 0.0
        %1391 = vmatpush1.msra.mxu0 0.0
        %1392 = vmatprep.subr.mxu0 0.0
        %1393 = vmatpush1.msra.mxu0 0.0
        %1394 = vmatprep.subr.mxu0 0.0
        %1395 = vmatpush1.msra.mxu0 0.0
        %1396 = vmatprep.subr.mxu0 0.0
        %1397 = vmatpush1.msra.mxu0 0.0
        %1398 = vmatprep.subr.mxu0 0.0
        %1399 = vmatpush1.msra.mxu0 0.0
        %1400 = vmatprep.subr.mxu0 0.0
        %1401 = vmatpush1.msra.mxu0 0.0
        %1402 = vmatprep.subr.mxu0 0.0
        %1403 = vmatpush1.msra.mxu0 0.0
        %1404 = vmatprep.subr.mxu0 0.0
        %1405 = vmatpush1.msra.mxu0 0.0
        %1406 = vmatprep.subr.mxu0 0.0
        %1407 = vmatpush1.msra.mxu0 0.0
        %1408 = vmatprep.subr.mxu0 0.0
        %1409 = vmatpush1.msra.mxu0 0.0
        %1410 = vmatprep.subr.mxu0 0.0
        %1411 = vmatpush1.msra.mxu0 0.0
        %1412 = vmatprep.subr.mxu0 0.0
        %1413 = vmatpush1.msra.mxu0 0.0
        %1414 = vmatprep.subr.mxu0 0.0
        %1415 = vmatpush1.msra.mxu0 0.0
        %1416 = vmatprep.subr.mxu0 0.0
        %1417 = vmatpush1.msra.mxu0 0.0
        %1418 = vmatprep.subr.mxu0 0.0
        %1419 = vmatpush1.msra.mxu0 0.0
        %1420 = vmatprep.subr.mxu0 0.0
        %1421 = vmatpush1.msra.mxu0 0.0
        %1422 = vmatprep.subr.mxu0 0.0
        %1423 = vmatpush1.msra.mxu0 0.0
        %1424 = vmatprep.subr.mxu0 0.0
        %1425 = vmatpush1.msra.mxu0 0.0
        %1426 = vmatprep.subr.mxu0 0.0
        %1427 = vmatpush1.msra.mxu0 0.0
        %1428 = vmatprep.subr.mxu0 0.0
        %1429 = vmatpush1.msra.mxu0 0.0
        %1430 = vmatprep.subr.mxu0 0.0
        %1431 = vmatpush1.msra.mxu0 0.0
        %1432 = vmatprep.subr.mxu0 0.0
        %1433 = vmatpush1.msra.mxu0 0.0
        %1434 = vmatprep.subr.mxu0 0.0
        %1435 = vmatpush1.msra.mxu0 0.0
        %1436 = vmatprep.subr.mxu0 0.0
        %1437 = vmatpush1.msra.mxu0 0.0
        %1438 = vmatprep.subr.mxu0 0.0
        %1439 = vmatpush1.msra.mxu0 0.0
        %1440 = vmatprep.mubr.f32.mxu0 0.0
        %1441 = vmatmul.mubr.f32.gmra.mrb[0].mxu0 %v1374
        %v1442 = vpop.f32.mrb[0].mxu0
        %v1443 = vadd.f32 %v1371, %v1442
        %v1444 = vpop.f32.mrb[0].mxu0
        %1445 = vdwg.mxu0
        %1446 = vst.msk [vmem:[%s449] sm:$0xff] %vm455, %v1443
        %s1447 = sand.u32 %s221, 1
        %s1448 = scalar_lea.sflag [#allocation5], %s1447
        %s1449 = sand.u32 %s221, 1
        %s1450 = smul.addr %s1449, 8
        %s1451 = scalar_lea.vmem [#allocation15], %s1450
        // Predicated region
        $region81: #{tpu_custom_call.1} parent=51 // pred_check
          %p1452 = pneg %p231
        $region82: #{tpu_custom_call.1} parent=51 // pred_check_branch
          %1454 = sbr.rel (%p1452) target = $region84
        $region83: #{tpu_custom_call.1} parent=51 // pred_region
          %s1456 = ssub.s32 128, 128
          %1457 = vsyncadd %s1448, %s1456
          %s1458 = smul.addr %s30, 128
          %s1459 = scalar_lea.hbm %s8, %s1458
          %s1461 = sshll.u32 %s1451, 4
          %s1462 = int_to_ptr.vmem [resolvable:$true] %s1461
          %1464 = dma.vmem_to_hbm [thread:$0]  %s1462, 128, %s1459, %s1448
        $region84: #{tpu_custom_call.1} parent=51 // pred_fallthru
          _
      $region52: #{tpu_custom_call.1} parent=5 // pred_fallthru
        _
      %p1465 = scmp.le.s32.totalorder 2, %s25
      // Predicated region
      $region85: #{tpu_custom_call.1} parent=5 // pred_check
        %p1466 = pneg %p1465
      $region86: #{tpu_custom_call.1} parent=5 // pred_check_branch
        %1468 = sbr.rel (%p1466) target = $region88
      $region87: #{tpu_custom_call.1} parent=5 // pred_region
        %s1469 = ssub.s32 %s25, 2
        // Predicated region
        $region89: #{tpu_custom_call.1} parent=87 // pred_check
          %p1470 = pneg %p237
        $region90: #{tpu_custom_call.1} parent=87 // pred_check_branch
          %1472 = sbr.rel (%p1470) target = $region92
        $region91: #{tpu_custom_call.1} parent=87 // pred_region
          %s1473 = sand.u32 %s222, 1
          %s1474 = scalar_lea.sflag [#allocation5], %s1473
          %s1475 = sand.u32 %s222, 1
          %s1476 = smul.addr %s1475, 8
          %s1477 = scalar_lea.vmem [#allocation15], %s1476
          %1478 = dma.done %s1474, 128
        $region92: #{tpu_custom_call.1} parent=87 // pred_fallthru
          _
      $region88: #{tpu_custom_call.1} parent=5 // pred_fallthru
        _
    $region6: #{tpu_custom_call.1} parent=1 // loop_footer
      %s29 = sadd.s32 1, %s25
    $region7: #{tpu_custom_call.1} parent=1 // loop_footer_branch
      %24 = sbr.rel target = $region3
    $region8: #{tpu_custom_call.1} parent=1 // loop_exit
      _
    %1479 = vsyncpa [#allocation4], 1
    %s1480 = scalar_lea.sflag [#allocation4], 1
    %1481 = vsyncpa %s1480, 1
    %1482 = vsyncpa [#allocation7], 1
    %s1483 = scalar_lea.sflag [#allocation7], 1
    %1484 = vsyncpa %s1483, 1
    %1485 = vsyncpa [#allocation10], 1
    %1486 = vsyncpa [#allocation13], 1
    %1487 = vsyncpa [#allocation5], 1
    %s1488 = scalar_lea.sflag [#allocation5], 1
    %1489 = vsyncpa %s1488, 1

</llo_original>
